<compile_context>
chip_gen: v5e
topology: v5e:2x2
jax: 0.10.0
libtpu: 0.0.40
codegen_flags: <defaults>
</compile_context>

<pallas_src>
import jax
import jax.numpy as jnp
from jax.experimental import pallas as pl
from jax.experimental.pallas import tpu as pltpu


def _make_kernel(H, W, P, Ng):
    PW = P * W

    def _cyc(a, s):
        # value at lane (j + s) mod PW (cyclic shift of the lane axis).
        # TODO(synk): could map to pltpu.roll (XLU rotate); concat-of-slices is used
        # for guaranteed lowering with identical semantics.
        return jnp.concatenate([a[..., s:], a[..., :s]], axis=-1)

    def kernel(x_ref, y_ref, o_ref):
        # x_ref: (Ng, 2, H, PW) logits | y_ref: (Ng, 3, H, PW) RGB | o_ref: (Ng, H, PW)
        x = x_ref[...].astype(jnp.float32)
        y = y_ref[...].astype(jnp.float32)

        # Hoisted boundary masks (per packed W-segment).
        lane = jax.lax.broadcasted_iota(jnp.int32, (Ng, H, PW), 2)
        lane_mod = (lane % W) if P > 1 else lane
        at_left = lane_mod == 0            # column 0 of each packed sample
        at_right = lane_mod == W - 1       # column W-1 of each packed sample

        def refl_ud(a):
            # Reflected vertical neighbors (ReflectionPad2d(1) along H), no pad buffer.
            up = jnp.concatenate([a[:, 1:2, :], a[:, :H - 1, :]], axis=1)      # a[i-1]
            down = jnp.concatenate([a[:, 1:, :], a[:, H - 2:H - 1, :]], axis=1)  # a[i+1]
            return up, down

        def refl_lr(a):
            # Reflected horizontal neighbors within each packed W-segment.
            jm1 = _cyc(a, PW - 1)                      # a[.., j-1] (cyclic)
            jp1 = _cyc(a, 1)                           # a[.., j+1] (cyclic)
            left = jnp.where(at_left, jp1, jm1)        # j==0   -> a[.., 1]
            right = jnp.where(at_right, jm1, jp1)      # j==W-1 -> a[.., W-2]
            return left, right

        # --- mean over RGB of the Sobel gradient magnitude (separable filters) ---
        g = jnp.zeros((Ng, H, PW), jnp.float32)
        for c in range(3):
            im = y[:, c]
            up, down = refl_ud(im)
            s = up + 2.0 * im + down       # vertical [1,2,1] smooth
            d = up - down                  # vertical [1,0,-1] diff
            sl, sr = refl_lr(s)
            gh = sl - sr                   # horizontal [1,0,-1] of s  -> sobel_h
            dl, dr = refl_lr(d)
            gv = dl + 2.0 * d + dr         # horizontal [1,2,1] of d   -> sobel_v
            g = g + jnp.sqrt(gh * gh + gv * gv + 1e-8)
        g = g * (1.0 / 3.0)

        # --- per-sample global min/max normalization ---
        gmax = jnp.max(g, axis=1, keepdims=True)   # (Ng, 1, PW) reduce over H
        gmin = jnp.min(g, axis=1, keepdims=True)
        if P > 1:
            # Segmented (per W-wide lane group) reduction tree; W is a power of two.
            lane1 = jax.lax.broadcasted_iota(jnp.int32, (Ng, 1, PW), 2) % W
            step = 1
            while step < W:
                in_seg = lane1 < (W - step)
                wrap = (step - W) % PW
                gmax = jnp.maximum(
                    gmax, jnp.where(in_seg, _cyc(gmax, step), _cyc(gmax, wrap)))
                gmin = jnp.minimum(
                    gmin, jnp.where(in_seg, _cyc(gmin, step), _cyc(gmin, wrap)))
                step *= 2
        else:
            gmax = jnp.max(gmax, axis=2, keepdims=True)
            gmin = jnp.min(gmin, axis=2, keepdims=True)

        rng = gmax - gmin + 1e-8
        inv = pl.reciprocal(rng, approx=True)
        inv = inv * (2.0 - rng * inv)              # one Newton step -> ~f32 accuracy
        gy = (g - gmin) * inv

        # --- 2-class cross-entropy against log_softmax(x) ---
        x0 = x[:, 0]
        x1 = x[:, 1]
        diff = x0 - x1
        lse = jnp.maximum(x0, x1) + jnp.log(1.0 + jnp.exp(-jnp.abs(diff)))
        o_ref[...] = -((x1 - lse) + gy * diff)

    return kernel


def grad_loss(x, y):
    """x: (N, 2, H, W) logits, y: (N, 3, H, W) image. Returns (N, 1, H, W) float32."""
    N, Cx, H, W = x.shape
    assert Cx == 2, "x must have 2 channels (edge / non-edge logits)"
    assert y.shape == (N, 3, H, W), "y must be (N, 3, H, W)"
    assert H >= 2 and W >= 2, "reflection padding needs H, W >= 2"
    assert H == W, "reference normalize (max_pool2d kernel_size=H) assumes square images"

    # Lane packing factor: pack P samples along the lane axis when W is a small power of two.
    if W < 128 and (W & (W - 1)) == 0:
        P = 128 // W
    else:
        P = 1  # TODO(synk): large / non-pow2 W keeps one sample per lane group
    PW = P * W
    G = -(-N // P)  # packed groups

    def pack(a):
        C = a.shape[1]
        a = a.astype(jnp.float32)
        pad = G * P - N
        if pad:
            a = jnp.concatenate([a, jnp.zeros((pad, C, H, W), jnp.float32)], axis=0)
        # (G*P, C, H, W) -> (G, C, H, P*W): sample p occupies lanes [p*W, (p+1)*W)
        return a.reshape(G, P, C, H, W).transpose(0, 2, 3, 1, 4).reshape(G, C, H, PW)

    xp, yp = pack(x), pack(y)

    # Groups per grid step: amortize per-step overhead, stay inside a small VMEM
    # budget, and keep >= 2 grid steps when possible (both v7x TensorCores busy).
    bytes_per_group = (2 + 3 + 1) * H * PW * 4
    ng = max(1, min(G, (4 << 20) // bytes_per_group))
    if G >= 2:
        ng = max(1, min(ng, G // 2))
    while G % ng:
        ng -= 1
    grid = G // ng

    # Explicit VMEM budget (double-buffered blocks + temporaries), capped for v7x.
    vmem_limit = int(min(32 << 20, max(8 << 20, 12 * ng * bytes_per_group)))
    # TODO(synk): very large H, W (whole-sample-resident no longer fits VMEM) would
    # need spatial tiling with a halo row/col and a two-pass min/max.

    out_p = pl.pallas_call(
        _make_kernel(H, W, P, ng),
        out_shape=jax.ShapeDtypeStruct((G, H, PW), jnp.float32),
        grid_spec=pltpu.PrefetchScalarGridSpec(
            num_scalar_prefetch=0,
            grid=(grid,),
            in_specs=[
                pl.BlockSpec((ng, 2, H, PW), lambda i: (i, 0, 0, 0)),
                pl.BlockSpec((ng, 3, H, PW), lambda i: (i, 0, 0, 0)),
            ],
            out_specs=pl.BlockSpec((ng, H, PW), lambda i: (i, 0, 0)),
        ),
        compiler_params=pltpu.CompilerParams(
            dimension_semantics=("parallel",),
            vmem_limit_bytes=vmem_limit,
        ),
    )(xp, yp)

    # Unpack (G, H, P*W) -> (N, 1, H, W)
    out = out_p.reshape(G, H, P, W).transpose(0, 2, 1, 3).reshape(G * P, 1, H, W)
    return out[:N]


def _grad_loss_ref(x, y):
    """Pure-JAX reference (mirrors the PyTorch forward) for a sanity check."""
    sob = jnp.array([[1., 0., -1.], [2., 0., -2.], [1., 0., -1.]], jnp.float32)

    def grad_mag_ch(im):  # im: (N, H, W)
        H, W = im.shape[1], im.shape[2]
        p = jnp.pad(im, ((0, 0), (1, 1), (1, 1)), mode="reflect")

        def conv(w):
            out = jnp.zeros_like(im)
            for di in range(3):
                for dj in range(3):
                    out = out + w[di, dj] * p[:, di:di + H, dj:dj + W]
            return out

        gh = conv(sob)
        gv = conv(sob.T)
        return jnp.sqrt(gh * gh + gv * gv + 1e-8)

    g = (grad_mag_ch(y[:, 0]) + grad_mag_ch(y[:, 1]) + grad_mag_ch(y[:, 2])) / 3.0
    gmax = jnp.max(g, axis=(1, 2), keepdims=True)
    gmin = jnp.min(g, axis=(1, 2), keepdims=True)
    gy = (g - gmin) / (gmax - gmin + 1e-8)
    lsm = jax.nn.log_softmax(x, axis=1)
    ce = -(gy * lsm[:, 0] + (1.0 - gy) * lsm[:, 1])
    return ce[:, None]


if __name__ == "__main__":
    key = jax.random.PRNGKey(0)
    kx, ky = jax.random.split(key)
    N, H, W = 32, 16, 16
    x = jax.random.normal(kx, (N, 2, H, W), dtype=jnp.float32)   # logits
    y = jax.random.uniform(ky, (N, 3, H, W), dtype=jnp.float32)  # RGB target

    out = jax.block_until_ready(grad_loss(x, y))
    assert out.shape == (N, 1, H, W)

    ref = _grad_loss_ref(x, y)
    max_err = float(jnp.max(jnp.abs(out - ref)))
    assert jnp.allclose(out, ref, atol=5e-4, rtol=5e-4), f"mismatch vs reference (max abs err {max_err})"
    print("KERNEL_OK")
</pallas_src>

<mosaic_0001>
module attributes {stable_mosaic.version = 11 : i64} {
  func.func @kernel(%arg0: i32, %arg1: memref<2x2x16x128xf32, #tpu.memory_space<vmem>>, %arg2: memref<2x3x16x128xf32, #tpu.memory_space<vmem>>, %arg3: memref<2x16x128xf32, #tpu.memory_space<vmem>>) attributes {dimension_semantics = [#tpu.dimension_semantics<parallel>], iteration_bounds = array<i64: 2>, scalar_prefetch = 0 : i64, scratch_operands = 0 : i64, tpu.core_type = #tpu.core_type<tc>, window_params = [{transform_indices = @transform_0, window_bounds = array<i64: 2, 2, 16, 128>}, {transform_indices = @transform_1, window_bounds = array<i64: 2, 3, 16, 128>}, {transform_indices = @transform_2, window_bounds = array<i64: 2, 16, 128>}]} {
    %c0 = arith.constant 0 : index
    %c0_0 = arith.constant 0 : index
    %c0_1 = arith.constant 0 : index
    %c0_2 = arith.constant 0 : index
    %0 = vector.load %arg1[%c0, %c0_0, %c0_1, %c0_2] : memref<2x2x16x128xf32, #tpu.memory_space<vmem>>, vector<2x2x16x128xf32>
    %c0_3 = arith.constant 0 : index
    %c0_4 = arith.constant 0 : index
    %c0_5 = arith.constant 0 : index
    %c0_6 = arith.constant 0 : index
    %1 = vector.load %arg2[%c0_3, %c0_4, %c0_5, %c0_6] : memref<2x3x16x128xf32, #tpu.memory_space<vmem>>, vector<2x3x16x128xf32>
    %2 = tpu.iota {dimensions = array<i32: 2>} : vector<2x16x128xi32>
    %c16_i32 = arith.constant 16 : i32
    %c0_i32 = arith.constant 0 : i32
    %3 = arith.cmpi eq, %c16_i32, %c0_i32 : i32
    %c1_i32 = arith.constant 1 : i32
    %4 = arith.select %3, %c1_i32, %c16_i32 : i32
    %5 = vector.broadcast %4 : i32 to vector<2x16x128xi32>
    %6 = arith.remsi %2, %5 : vector<2x16x128xi32>
    %c0_i32_7 = arith.constant 0 : i32
    %7 = vector.broadcast %c0_i32_7 : i32 to vector<2x16x128xi32>
    %8 = arith.cmpi ne, %6, %7 : vector<2x16x128xi32>
    %c0_i32_8 = arith.constant 0 : i32
    %9 = vector.broadcast %c0_i32_8 : i32 to vector<2x16x128xi32>
    %10 = arith.cmpi slt, %6, %9 : vector<2x16x128xi32>
    %c0_i32_9 = arith.constant 0 : i32
    %11 = arith.cmpi slt, %4, %c0_i32_9 : i32
    %12 = vector.broadcast %11 : i1 to vector<2x16x128xi1>
    %13 = vector.broadcast %12 : vector<2x16x128xi1> to vector<2x16x128xi1>
    %14 = arith.xori %10, %13 : vector<2x16x128xi1>
    %15 = arith.andi %14, %8 : vector<2x16x128xi1>
    %16 = vector.broadcast %4 : i32 to vector<2x16x128xi32>
    %17 = arith.addi %6, %16 : vector<2x16x128xi32>
    %18 = arith.select %15, %17, %6 : vector<2x16x128xi1>, vector<2x16x128xi32>
    %c0_i32_10 = arith.constant 0 : i32
    %19 = vector.broadcast %c0_i32_10 : i32 to vector<2x16x128xi32>
    %20 = arith.cmpi eq, %18, %19 : vector<2x16x128xi32>
    %c15_i32 = arith.constant 15 : i32
    %21 = vector.broadcast %c15_i32 : i32 to vector<2x16x128xi32>
    %22 = arith.cmpi eq, %18, %21 : vector<2x16x128xi32>
    %cst = arith.constant 0.000000e+00 : f32
    %23 = vector.broadcast %cst : f32 to vector<2x16x128xf32>
    %24 = vector.extract_strided_slice %1 {offsets = [0, 0, 0, 0], sizes = [2, 1, 16, 128], strides = [1, 1, 1, 1]} : vector<2x3x16x128xf32> to vector<2x1x16x128xf32>
    %25 = vector.shape_cast %24 : vector<2x1x16x128xf32> to vector<2x16x128xf32>
    %26 = vector.extract_strided_slice %25 {offsets = [0, 1, 0], sizes = [2, 1, 128], strides = [1, 1, 1]} : vector<2x16x128xf32> to vector<2x1x128xf32>
    %27 = vector.extract_strided_slice %25 {offsets = [0, 0, 0], sizes = [2, 15, 128], strides = [1, 1, 1]} : vector<2x16x128xf32> to vector<2x15x128xf32>
    %28 = tpu.concatenate %26, %27 in 1 : vector<2x1x128xf32>, vector<2x15x128xf32> -> vector<2x16x128xf32>
    %29 = vector.extract_strided_slice %25 {offsets = [0, 1, 0], sizes = [2, 15, 128], strides = [1, 1, 1]} : vector<2x16x128xf32> to vector<2x15x128xf32>
    %30 = vector.extract_strided_slice %25 {offsets = [0, 14, 0], sizes = [2, 1, 128], strides = [1, 1, 1]} : vector<2x16x128xf32> to vector<2x1x128xf32>
    %31 = tpu.concatenate %29, %30 in 1 : vector<2x15x128xf32>, vector<2x1x128xf32> -> vector<2x16x128xf32>
    %cst_11 = arith.constant 2.000000e+00 : f32
    %32 = vector.broadcast %cst_11 : f32 to vector<2x16x128xf32>
    %33 = arith.mulf %32, %25 : vector<2x16x128xf32>
    %34 = arith.addf %28, %33 : vector<2x16x128xf32>
    %35 = arith.addf %34, %31 : vector<2x16x128xf32>
    %36 = arith.subf %28, %31 : vector<2x16x128xf32>
    %37 = vector.extract_strided_slice %35 {offsets = [0, 0, 127], sizes = [2, 16, 1], strides = [1, 1, 1]} : vector<2x16x128xf32> to vector<2x16x1xf32>
    %38 = vector.extract_strided_slice %35 {offsets = [0, 0, 0], sizes = [2, 16, 127], strides = [1, 1, 1]} : vector<2x16x128xf32> to vector<2x16x127xf32>
    %39 = tpu.concatenate %37, %38 in 2 : vector<2x16x1xf32>, vector<2x16x127xf32> -> vector<2x16x128xf32>
    %40 = vector.extract_strided_slice %35 {offsets = [0, 0, 1], sizes = [2, 16, 127], strides = [1, 1, 1]} : vector<2x16x128xf32> to vector<2x16x127xf32>
    %41 = vector.extract_strided_slice %35 {offsets = [0, 0, 0], sizes = [2, 16, 1], strides = [1, 1, 1]} : vector<2x16x128xf32> to vector<2x16x1xf32>
    %42 = tpu.concatenate %40, %41 in 2 : vector<2x16x127xf32>, vector<2x16x1xf32> -> vector<2x16x128xf32>
    %43 = arith.select %20, %42, %39 : vector<2x16x128xi1>, vector<2x16x128xf32>
    %44 = arith.select %22, %39, %42 : vector<2x16x128xi1>, vector<2x16x128xf32>
    %45 = arith.subf %43, %44 : vector<2x16x128xf32>
    %46 = vector.extract_strided_slice %36 {offsets = [0, 0, 127], sizes = [2, 16, 1], strides = [1, 1, 1]} : vector<2x16x128xf32> to vector<2x16x1xf32>
    %47 = vector.extract_strided_slice %36 {offsets = [0, 0, 0], sizes = [2, 16, 127], strides = [1, 1, 1]} : vector<2x16x128xf32> to vector<2x16x127xf32>
    %48 = tpu.concatenate %46, %47 in 2 : vector<2x16x1xf32>, vector<2x16x127xf32> -> vector<2x16x128xf32>
    %49 = vector.extract_strided_slice %36 {offsets = [0, 0, 1], sizes = [2, 16, 127], strides = [1, 1, 1]} : vector<2x16x128xf32> to vector<2x16x127xf32>
    %50 = vector.extract_strided_slice %36 {offsets = [0, 0, 0], sizes = [2, 16, 1], strides = [1, 1, 1]} : vector<2x16x128xf32> to vector<2x16x1xf32>
    %51 = tpu.concatenate %49, %50 in 2 : vector<2x16x127xf32>, vector<2x16x1xf32> -> vector<2x16x128xf32>
    %52 = arith.select %20, %51, %48 : vector<2x16x128xi1>, vector<2x16x128xf32>
    %53 = arith.select %22, %48, %51 : vector<2x16x128xi1>, vector<2x16x128xf32>
    %cst_12 = arith.constant 2.000000e+00 : f32
    %54 = vector.broadcast %cst_12 : f32 to vector<2x16x128xf32>
    %55 = arith.mulf %54, %36 : vector<2x16x128xf32>
    %56 = arith.addf %52, %55 : vector<2x16x128xf32>
    %57 = arith.addf %56, %53 : vector<2x16x128xf32>
    %58 = arith.mulf %45, %45 : vector<2x16x128xf32>
    %59 = arith.mulf %57, %57 : vector<2x16x128xf32>
    %60 = arith.addf %58, %59 : vector<2x16x128xf32>
    %cst_13 = arith.constant 9.99999993E-9 : f32
    %61 = vector.broadcast %cst_13 : f32 to vector<2x16x128xf32>
    %62 = arith.addf %60, %61 : vector<2x16x128xf32>
    %63 = math.sqrt %62 : vector<2x16x128xf32>
    %64 = arith.addf %23, %63 : vector<2x16x128xf32>
    %65 = vector.extract_strided_slice %1 {offsets = [0, 1, 0, 0], sizes = [2, 1, 16, 128], strides = [1, 1, 1, 1]} : vector<2x3x16x128xf32> to vector<2x1x16x128xf32>
    %66 = vector.shape_cast %65 : vector<2x1x16x128xf32> to vector<2x16x128xf32>
    %67 = vector.extract_strided_slice %66 {offsets = [0, 1, 0], sizes = [2, 1, 128], strides = [1, 1, 1]} : vector<2x16x128xf32> to vector<2x1x128xf32>
    %68 = vector.extract_strided_slice %66 {offsets = [0, 0, 0], sizes = [2, 15, 128], strides = [1, 1, 1]} : vector<2x16x128xf32> to vector<2x15x128xf32>
    %69 = tpu.concatenate %67, %68 in 1 : vector<2x1x128xf32>, vector<2x15x128xf32> -> vector<2x16x128xf32>
    %70 = vector.extract_strided_slice %66 {offsets = [0, 1, 0], sizes = [2, 15, 128], strides = [1, 1, 1]} : vector<2x16x128xf32> to vector<2x15x128xf32>
    %71 = vector.extract_strided_slice %66 {offsets = [0, 14, 0], sizes = [2, 1, 128], strides = [1, 1, 1]} : vector<2x16x128xf32> to vector<2x1x128xf32>
    %72 = tpu.concatenate %70, %71 in 1 : vector<2x15x128xf32>, vector<2x1x128xf32> -> vector<2x16x128xf32>
    %cst_14 = arith.constant 2.000000e+00 : f32
    %73 = vector.broadcast %cst_14 : f32 to vector<2x16x128xf32>
    %74 = arith.mulf %73, %66 : vector<2x16x128xf32>
    %75 = arith.addf %69, %74 : vector<2x16x128xf32>
    %76 = arith.addf %75, %72 : vector<2x16x128xf32>
    %77 = arith.subf %69, %72 : vector<2x16x128xf32>
    %78 = vector.extract_strided_slice %76 {offsets = [0, 0, 127], sizes = [2, 16, 1], strides = [1, 1, 1]} : vector<2x16x128xf32> to vector<2x16x1xf32>
    %79 = vector.extract_strided_slice %76 {offsets = [0, 0, 0], sizes = [2, 16, 127], strides = [1, 1, 1]} : vector<2x16x128xf32> to vector<2x16x127xf32>
    %80 = tpu.concatenate %78, %79 in 2 : vector<2x16x1xf32>, vector<2x16x127xf32> -> vector<2x16x128xf32>
    %81 = vector.extract_strided_slice %76 {offsets = [0, 0, 1], sizes = [2, 16, 127], strides = [1, 1, 1]} : vector<2x16x128xf32> to vector<2x16x127xf32>
    %82 = vector.extract_strided_slice %76 {offsets = [0, 0, 0], sizes = [2, 16, 1], strides = [1, 1, 1]} : vector<2x16x128xf32> to vector<2x16x1xf32>
    %83 = tpu.concatenate %81, %82 in 2 : vector<2x16x127xf32>, vector<2x16x1xf32> -> vector<2x16x128xf32>
    %84 = arith.select %20, %83, %80 : vector<2x16x128xi1>, vector<2x16x128xf32>
    %85 = arith.select %22, %80, %83 : vector<2x16x128xi1>, vector<2x16x128xf32>
    %86 = arith.subf %84, %85 : vector<2x16x128xf32>
    %87 = vector.extract_strided_slice %77 {offsets = [0, 0, 127], sizes = [2, 16, 1], strides = [1, 1, 1]} : vector<2x16x128xf32> to vector<2x16x1xf32>
    %88 = vector.extract_strided_slice %77 {offsets = [0, 0, 0], sizes = [2, 16, 127], strides = [1, 1, 1]} : vector<2x16x128xf32> to vector<2x16x127xf32>
    %89 = tpu.concatenate %87, %88 in 2 : vector<2x16x1xf32>, vector<2x16x127xf32> -> vector<2x16x128xf32>
    %90 = vector.extract_strided_slice %77 {offsets = [0, 0, 1], sizes = [2, 16, 127], strides = [1, 1, 1]} : vector<2x16x128xf32> to vector<2x16x127xf32>
    %91 = vector.extract_strided_slice %77 {offsets = [0, 0, 0], sizes = [2, 16, 1], strides = [1, 1, 1]} : vector<2x16x128xf32> to vector<2x16x1xf32>
    %92 = tpu.concatenate %90, %91 in 2 : vector<2x16x127xf32>, vector<2x16x1xf32> -> vector<2x16x128xf32>
    %93 = arith.select %20, %92, %89 : vector<2x16x128xi1>, vector<2x16x128xf32>
    %94 = arith.select %22, %89, %92 : vector<2x16x128xi1>, vector<2x16x128xf32>
    %cst_15 = arith.constant 2.000000e+00 : f32
    %95 = vector.broadcast %cst_15 : f32 to vector<2x16x128xf32>
    %96 = arith.mulf %95, %77 : vector<2x16x128xf32>
    %97 = arith.addf %93, %96 : vector<2x16x128xf32>
    %98 = arith.addf %97, %94 : vector<2x16x128xf32>
    %99 = arith.mulf %86, %86 : vector<2x16x128xf32>
    %100 = arith.mulf %98, %98 : vector<2x16x128xf32>
    %101 = arith.addf %99, %100 : vector<2x16x128xf32>
    %cst_16 = arith.constant 9.99999993E-9 : f32
    %102 = vector.broadcast %cst_16 : f32 to vector<2x16x128xf32>
    %103 = arith.addf %101, %102 : vector<2x16x128xf32>
    %104 = math.sqrt %103 : vector<2x16x128xf32>
    %105 = arith.addf %64, %104 : vector<2x16x128xf32>
    %106 = vector.extract_strided_slice %1 {offsets = [0, 2, 0, 0], sizes = [2, 1, 16, 128], strides = [1, 1, 1, 1]} : vector<2x3x16x128xf32> to vector<2x1x16x128xf32>
    %107 = vector.shape_cast %106 : vector<2x1x16x128xf32> to vector<2x16x128xf32>
    %108 = vector.extract_strided_slice %107 {offsets = [0, 1, 0], sizes = [2, 1, 128], strides = [1, 1, 1]} : vector<2x16x128xf32> to vector<2x1x128xf32>
    %109 = vector.extract_strided_slice %107 {offsets = [0, 0, 0], sizes = [2, 15, 128], strides = [1, 1, 1]} : vector<2x16x128xf32> to vector<2x15x128xf32>
    %110 = tpu.concatenate %108, %109 in 1 : vector<2x1x128xf32>, vector<2x15x128xf32> -> vector<2x16x128xf32>
    %111 = vector.extract_strided_slice %107 {offsets = [0, 1, 0], sizes = [2, 15, 128], strides = [1, 1, 1]} : vector<2x16x128xf32> to vector<2x15x128xf32>
    %112 = vector.extract_strided_slice %107 {offsets = [0, 14, 0], sizes = [2, 1, 128], strides = [1, 1, 1]} : vector<2x16x128xf32> to vector<2x1x128xf32>
    %113 = tpu.concatenate %111, %112 in 1 : vector<2x15x128xf32>, vector<2x1x128xf32> -> vector<2x16x128xf32>
    %cst_17 = arith.constant 2.000000e+00 : f32
    %114 = vector.broadcast %cst_17 : f32 to vector<2x16x128xf32>
    %115 = arith.mulf %114, %107 : vector<2x16x128xf32>
    %116 = arith.addf %110, %115 : vector<2x16x128xf32>
    %117 = arith.addf %116, %113 : vector<2x16x128xf32>
    %118 = arith.subf %110, %113 : vector<2x16x128xf32>
    %119 = vector.extract_strided_slice %117 {offsets = [0, 0, 127], sizes = [2, 16, 1], strides = [1, 1, 1]} : vector<2x16x128xf32> to vector<2x16x1xf32>
    %120 = vector.extract_strided_slice %117 {offsets = [0, 0, 0], sizes = [2, 16, 127], strides = [1, 1, 1]} : vector<2x16x128xf32> to vector<2x16x127xf32>
    %121 = tpu.concatenate %119, %120 in 2 : vector<2x16x1xf32>, vector<2x16x127xf32> -> vector<2x16x128xf32>
    %122 = vector.extract_strided_slice %117 {offsets = [0, 0, 1], sizes = [2, 16, 127], strides = [1, 1, 1]} : vector<2x16x128xf32> to vector<2x16x127xf32>
    %123 = vector.extract_strided_slice %117 {offsets = [0, 0, 0], sizes = [2, 16, 1], strides = [1, 1, 1]} : vector<2x16x128xf32> to vector<2x16x1xf32>
    %124 = tpu.concatenate %122, %123 in 2 : vector<2x16x127xf32>, vector<2x16x1xf32> -> vector<2x16x128xf32>
    %125 = arith.select %20, %124, %121 : vector<2x16x128xi1>, vector<2x16x128xf32>
    %126 = arith.select %22, %121, %124 : vector<2x16x128xi1>, vector<2x16x128xf32>
    %127 = arith.subf %125, %126 : vector<2x16x128xf32>
    %128 = vector.extract_strided_slice %118 {offsets = [0, 0, 127], sizes = [2, 16, 1], strides = [1, 1, 1]} : vector<2x16x128xf32> to vector<2x16x1xf32>
    %129 = vector.extract_strided_slice %118 {offsets = [0, 0, 0], sizes = [2, 16, 127], strides = [1, 1, 1]} : vector<2x16x128xf32> to vector<2x16x127xf32>
    %130 = tpu.concatenate %128, %129 in 2 : vector<2x16x1xf32>, vector<2x16x127xf32> -> vector<2x16x128xf32>
    %131 = vector.extract_strided_slice %118 {offsets = [0, 0, 1], sizes = [2, 16, 127], strides = [1, 1, 1]} : vector<2x16x128xf32> to vector<2x16x127xf32>
    %132 = vector.extract_strided_slice %118 {offsets = [0, 0, 0], sizes = [2, 16, 1], strides = [1, 1, 1]} : vector<2x16x128xf32> to vector<2x16x1xf32>
    %133 = tpu.concatenate %131, %132 in 2 : vector<2x16x127xf32>, vector<2x16x1xf32> -> vector<2x16x128xf32>
    %134 = arith.select %20, %133, %130 : vector<2x16x128xi1>, vector<2x16x128xf32>
    %135 = arith.select %22, %130, %133 : vector<2x16x128xi1>, vector<2x16x128xf32>
    %cst_18 = arith.constant 2.000000e+00 : f32
    %136 = vector.broadcast %cst_18 : f32 to vector<2x16x128xf32>
    %137 = arith.mulf %136, %118 : vector<2x16x128xf32>
    %138 = arith.addf %134, %137 : vector<2x16x128xf32>
    %139 = arith.addf %138, %135 : vector<2x16x128xf32>
    %140 = arith.mulf %127, %127 : vector<2x16x128xf32>
    %141 = arith.mulf %139, %139 : vector<2x16x128xf32>
    %142 = arith.addf %140, %141 : vector<2x16x128xf32>
    %cst_19 = arith.constant 9.99999993E-9 : f32
    %143 = vector.broadcast %cst_19 : f32 to vector<2x16x128xf32>
    %144 = arith.addf %142, %143 : vector<2x16x128xf32>
    %145 = math.sqrt %144 : vector<2x16x128xf32>
    %146 = arith.addf %105, %145 : vector<2x16x128xf32>
    %cst_20 = arith.constant 0.333333343 : f32
    %147 = vector.broadcast %cst_20 : f32 to vector<2x16x128xf32>
    %148 = arith.mulf %146, %147 : vector<2x16x128xf32>
    %cst_21 = arith.constant dense<0xFF800000> : vector<2x128xf32>
    %149 = vector.multi_reduction <maximumf>, %148, %cst_21 [1] : vector<2x16x128xf32> to vector<2x128xf32>
    %150 = vector.shape_cast %149 : vector<2x128xf32> to vector<2x1x128xf32>
    %cst_22 = arith.constant dense<0x7F800000> : vector<2x128xf32>
    %151 = vector.multi_reduction <minimumf>, %148, %cst_22 [1] : vector<2x16x128xf32> to vector<2x128xf32>
    %152 = vector.shape_cast %151 : vector<2x128xf32> to vector<2x1x128xf32>
    %153 = tpu.iota {dimensions = array<i32: 2>} : vector<2x1x128xi32>
    %c16_i32_23 = arith.constant 16 : i32
    %c0_i32_24 = arith.constant 0 : i32
    %154 = arith.cmpi eq, %c16_i32_23, %c0_i32_24 : i32
    %c1_i32_25 = arith.constant 1 : i32
    %155 = arith.select %154, %c1_i32_25, %c16_i32_23 : i32
    %156 = vector.broadcast %155 : i32 to vector<2x1x128xi32>
    %157 = arith.remsi %153, %156 : vector<2x1x128xi32>
    %c0_i32_26 = arith.constant 0 : i32
    %158 = vector.broadcast %c0_i32_26 : i32 to vector<2x1x128xi32>
    %159 = arith.cmpi ne, %157, %158 : vector<2x1x128xi32>
    %c0_i32_27 = arith.constant 0 : i32
    %160 = vector.broadcast %c0_i32_27 : i32 to vector<2x1x128xi32>
    %161 = arith.cmpi slt, %157, %160 : vector<2x1x128xi32>
    %c0_i32_28 = arith.constant 0 : i32
    %162 = arith.cmpi slt, %155, %c0_i32_28 : i32
    %163 = vector.broadcast %162 : i1 to vector<2x1x128xi1>
    %164 = vector.broadcast %163 : vector<2x1x128xi1> to vector<2x1x128xi1>
    %165 = arith.xori %161, %164 : vector<2x1x128xi1>
    %166 = arith.andi %165, %159 : vector<2x1x128xi1>
    %167 = vector.broadcast %155 : i32 to vector<2x1x128xi32>
    %168 = arith.addi %157, %167 : vector<2x1x128xi32>
    %169 = arith.select %166, %168, %157 : vector<2x1x128xi1>, vector<2x1x128xi32>
    %c15_i32_29 = arith.constant 15 : i32
    %170 = vector.broadcast %c15_i32_29 : i32 to vector<2x1x128xi32>
    %171 = arith.cmpi slt, %169, %170 : vector<2x1x128xi32>
    %172 = vector.extract_strided_slice %150 {offsets = [0, 0, 1], sizes = [2, 1, 127], strides = [1, 1, 1]} : vector<2x1x128xf32> to vector<2x1x127xf32>
    %173 = vector.extract_strided_slice %150 {offsets = [0, 0, 0], sizes = [2, 1, 1], strides = [1, 1, 1]} : vector<2x1x128xf32> to vector<2x1x1xf32>
    %174 = tpu.concatenate %172, %173 in 2 : vector<2x1x127xf32>, vector<2x1x1xf32> -> vector<2x1x128xf32>
    %175 = vector.extract_strided_slice %150 {offsets = [0, 0, 113], sizes = [2, 1, 15], strides = [1, 1, 1]} : vector<2x1x128xf32> to vector<2x1x15xf32>
    %176 = vector.extract_strided_slice %150 {offsets = [0, 0, 0], sizes = [2, 1, 113], strides = [1, 1, 1]} : vector<2x1x128xf32> to vector<2x1x113xf32>
    %177 = tpu.concatenate %175, %176 in 2 : vector<2x1x15xf32>, vector<2x1x113xf32> -> vector<2x1x128xf32>
    %178 = arith.select %171, %174, %177 : vector<2x1x128xi1>, vector<2x1x128xf32>
    %179 = arith.maximumf %150, %178 : vector<2x1x128xf32>
    %180 = vector.extract_strided_slice %152 {offsets = [0, 0, 1], sizes = [2, 1, 127], strides = [1, 1, 1]} : vector<2x1x128xf32> to vector<2x1x127xf32>
    %181 = vector.extract_strided_slice %152 {offsets = [0, 0, 0], sizes = [2, 1, 1], strides = [1, 1, 1]} : vector<2x1x128xf32> to vector<2x1x1xf32>
    %182 = tpu.concatenate %180, %181 in 2 : vector<2x1x127xf32>, vector<2x1x1xf32> -> vector<2x1x128xf32>
    %183 = vector.extract_strided_slice %152 {offsets = [0, 0, 113], sizes = [2, 1, 15], strides = [1, 1, 1]} : vector<2x1x128xf32> to vector<2x1x15xf32>
    %184 = vector.extract_strided_slice %152 {offsets = [0, 0, 0], sizes = [2, 1, 113], strides = [1, 1, 1]} : vector<2x1x128xf32> to vector<2x1x113xf32>
    %185 = tpu.concatenate %183, %184 in 2 : vector<2x1x15xf32>, vector<2x1x113xf32> -> vector<2x1x128xf32>
    %186 = arith.select %171, %182, %185 : vector<2x1x128xi1>, vector<2x1x128xf32>
    %187 = arith.minimumf %152, %186 : vector<2x1x128xf32>
    %c14_i32 = arith.constant 14 : i32
    %188 = vector.broadcast %c14_i32 : i32 to vector<2x1x128xi32>
    %189 = arith.cmpi slt, %169, %188 : vector<2x1x128xi32>
    %190 = vector.extract_strided_slice %179 {offsets = [0, 0, 2], sizes = [2, 1, 126], strides = [1, 1, 1]} : vector<2x1x128xf32> to vector<2x1x126xf32>
    %191 = vector.extract_strided_slice %179 {offsets = [0, 0, 0], sizes = [2, 1, 2], strides = [1, 1, 1]} : vector<2x1x128xf32> to vector<2x1x2xf32>
    %192 = tpu.concatenate %190, %191 in 2 : vector<2x1x126xf32>, vector<2x1x2xf32> -> vector<2x1x128xf32>
    %193 = vector.extract_strided_slice %179 {offsets = [0, 0, 114], sizes = [2, 1, 14], strides = [1, 1, 1]} : vector<2x1x128xf32> to vector<2x1x14xf32>
    %194 = vector.extract_strided_slice %179 {offsets = [0, 0, 0], sizes = [2, 1, 114], strides = [1, 1, 1]} : vector<2x1x128xf32> to vector<2x1x114xf32>
    %195 = tpu.concatenate %193, %194 in 2 : vector<2x1x14xf32>, vector<2x1x114xf32> -> vector<2x1x128xf32>
    %196 = arith.select %189, %192, %195 : vector<2x1x128xi1>, vector<2x1x128xf32>
    %197 = arith.maximumf %179, %196 : vector<2x1x128xf32>
    %198 = vector.extract_strided_slice %187 {offsets = [0, 0, 2], sizes = [2, 1, 126], strides = [1, 1, 1]} : vector<2x1x128xf32> to vector<2x1x126xf32>
    %199 = vector.extract_strided_slice %187 {offsets = [0, 0, 0], sizes = [2, 1, 2], strides = [1, 1, 1]} : vector<2x1x128xf32> to vector<2x1x2xf32>
    %200 = tpu.concatenate %198, %199 in 2 : vector<2x1x126xf32>, vector<2x1x2xf32> -> vector<2x1x128xf32>
    %201 = vector.extract_strided_slice %187 {offsets = [0, 0, 114], sizes = [2, 1, 14], strides = [1, 1, 1]} : vector<2x1x128xf32> to vector<2x1x14xf32>
    %202 = vector.extract_strided_slice %187 {offsets = [0, 0, 0], sizes = [2, 1, 114], strides = [1, 1, 1]} : vector<2x1x128xf32> to vector<2x1x114xf32>
    %203 = tpu.concatenate %201, %202 in 2 : vector<2x1x14xf32>, vector<2x1x114xf32> -> vector<2x1x128xf32>
    %204 = arith.select %189, %200, %203 : vector<2x1x128xi1>, vector<2x1x128xf32>
    %205 = arith.minimumf %187, %204 : vector<2x1x128xf32>
    %c12_i32 = arith.constant 12 : i32
    %206 = vector.broadcast %c12_i32 : i32 to vector<2x1x128xi32>
    %207 = arith.cmpi slt, %169, %206 : vector<2x1x128xi32>
    %208 = vector.extract_strided_slice %197 {offsets = [0, 0, 4], sizes = [2, 1, 124], strides = [1, 1, 1]} : vector<2x1x128xf32> to vector<2x1x124xf32>
    %209 = vector.extract_strided_slice %197 {offsets = [0, 0, 0], sizes = [2, 1, 4], strides = [1, 1, 1]} : vector<2x1x128xf32> to vector<2x1x4xf32>
    %210 = tpu.concatenate %208, %209 in 2 : vector<2x1x124xf32>, vector<2x1x4xf32> -> vector<2x1x128xf32>
    %211 = vector.extract_strided_slice %197 {offsets = [0, 0, 116], sizes = [2, 1, 12], strides = [1, 1, 1]} : vector<2x1x128xf32> to vector<2x1x12xf32>
    %212 = vector.extract_strided_slice %197 {offsets = [0, 0, 0], sizes = [2, 1, 116], strides = [1, 1, 1]} : vector<2x1x128xf32> to vector<2x1x116xf32>
    %213 = tpu.concatenate %211, %212 in 2 : vector<2x1x12xf32>, vector<2x1x116xf32> -> vector<2x1x128xf32>
    %214 = arith.select %207, %210, %213 : vector<2x1x128xi1>, vector<2x1x128xf32>
    %215 = arith.maximumf %197, %214 : vector<2x1x128xf32>
    %216 = vector.extract_strided_slice %205 {offsets = [0, 0, 4], sizes = [2, 1, 124], strides = [1, 1, 1]} : vector<2x1x128xf32> to vector<2x1x124xf32>
    %217 = vector.extract_strided_slice %205 {offsets = [0, 0, 0], sizes = [2, 1, 4], strides = [1, 1, 1]} : vector<2x1x128xf32> to vector<2x1x4xf32>
    %218 = tpu.concatenate %216, %217 in 2 : vector<2x1x124xf32>, vector<2x1x4xf32> -> vector<2x1x128xf32>
    %219 = vector.extract_strided_slice %205 {offsets = [0, 0, 116], sizes = [2, 1, 12], strides = [1, 1, 1]} : vector<2x1x128xf32> to vector<2x1x12xf32>
    %220 = vector.extract_strided_slice %205 {offsets = [0, 0, 0], sizes = [2, 1, 116], strides = [1, 1, 1]} : vector<2x1x128xf32> to vector<2x1x116xf32>
    %221 = tpu.concatenate %219, %220 in 2 : vector<2x1x12xf32>, vector<2x1x116xf32> -> vector<2x1x128xf32>
    %222 = arith.select %207, %218, %221 : vector<2x1x128xi1>, vector<2x1x128xf32>
    %223 = arith.minimumf %205, %222 : vector<2x1x128xf32>
    %c8_i32 = arith.constant 8 : i32
    %224 = vector.broadcast %c8_i32 : i32 to vector<2x1x128xi32>
    %225 = arith.cmpi slt, %169, %224 : vector<2x1x128xi32>
    %226 = vector.extract_strided_slice %215 {offsets = [0, 0, 8], sizes = [2, 1, 120], strides = [1, 1, 1]} : vector<2x1x128xf32> to vector<2x1x120xf32>
    %227 = vector.extract_strided_slice %215 {offsets = [0, 0, 0], sizes = [2, 1, 8], strides = [1, 1, 1]} : vector<2x1x128xf32> to vector<2x1x8xf32>
    %228 = tpu.concatenate %226, %227 in 2 : vector<2x1x120xf32>, vector<2x1x8xf32> -> vector<2x1x128xf32>
    %229 = vector.extract_strided_slice %215 {offsets = [0, 0, 120], sizes = [2, 1, 8], strides = [1, 1, 1]} : vector<2x1x128xf32> to vector<2x1x8xf32>
    %230 = vector.extract_strided_slice %215 {offsets = [0, 0, 0], sizes = [2, 1, 120], strides = [1, 1, 1]} : vector<2x1x128xf32> to vector<2x1x120xf32>
    %231 = tpu.concatenate %229, %230 in 2 : vector<2x1x8xf32>, vector<2x1x120xf32> -> vector<2x1x128xf32>
    %232 = arith.select %225, %228, %231 : vector<2x1x128xi1>, vector<2x1x128xf32>
    %233 = arith.maximumf %215, %232 : vector<2x1x128xf32>
    %234 = vector.extract_strided_slice %223 {offsets = [0, 0, 8], sizes = [2, 1, 120], strides = [1, 1, 1]} : vector<2x1x128xf32> to vector<2x1x120xf32>
    %235 = vector.extract_strided_slice %223 {offsets = [0, 0, 0], sizes = [2, 1, 8], strides = [1, 1, 1]} : vector<2x1x128xf32> to vector<2x1x8xf32>
    %236 = tpu.concatenate %234, %235 in 2 : vector<2x1x120xf32>, vector<2x1x8xf32> -> vector<2x1x128xf32>
    %237 = vector.extract_strided_slice %223 {offsets = [0, 0, 120], sizes = [2, 1, 8], strides = [1, 1, 1]} : vector<2x1x128xf32> to vector<2x1x8xf32>
    %238 = vector.extract_strided_slice %223 {offsets = [0, 0, 0], sizes = [2, 1, 120], strides = [1, 1, 1]} : vector<2x1x128xf32> to vector<2x1x120xf32>
    %239 = tpu.concatenate %237, %238 in 2 : vector<2x1x8xf32>, vector<2x1x120xf32> -> vector<2x1x128xf32>
    %240 = arith.select %225, %236, %239 : vector<2x1x128xi1>, vector<2x1x128xf32>
    %241 = arith.minimumf %223, %240 : vector<2x1x128xf32>
    %242 = arith.subf %233, %241 : vector<2x1x128xf32>
    %cst_30 = arith.constant 9.99999993E-9 : f32
    %243 = vector.broadcast %cst_30 : f32 to vector<2x1x128xf32>
    %244 = arith.addf %242, %243 : vector<2x1x128xf32>
    %245 = tpu.reciprocal %244 {approx = true} : vector<2x1x128xf32> -> vector<2x1x128xf32>
    %246 = arith.mulf %244, %245 : vector<2x1x128xf32>
    %cst_31 = arith.constant 2.000000e+00 : f32
    %247 = vector.broadcast %cst_31 : f32 to vector<2x1x128xf32>
    %248 = arith.subf %247, %246 : vector<2x1x128xf32>
    %249 = arith.mulf %245, %248 : vector<2x1x128xf32>
    %250 = vector.broadcast %241 : vector<2x1x128xf32> to vector<2x16x128xf32>
    %251 = arith.subf %148, %250 : vector<2x16x128xf32>
    %252 = vector.broadcast %249 : vector<2x1x128xf32> to vector<2x16x128xf32>
    %253 = arith.mulf %251, %252 : vector<2x16x128xf32>
    %254 = vector.extract_strided_slice %0 {offsets = [0, 0, 0, 0], sizes = [2, 1, 16, 128], strides = [1, 1, 1, 1]} : vector<2x2x16x128xf32> to vector<2x1x16x128xf32>
    %255 = vector.shape_cast %254 : vector<2x1x16x128xf32> to vector<2x16x128xf32>
    %256 = vector.extract_strided_slice %0 {offsets = [0, 1, 0, 0], sizes = [2, 1, 16, 128], strides = [1, 1, 1, 1]} : vector<2x2x16x128xf32> to vector<2x1x16x128xf32>
    %257 = vector.shape_cast %256 : vector<2x1x16x128xf32> to vector<2x16x128xf32>
    %258 = arith.subf %255, %257 : vector<2x16x128xf32>
    %259 = arith.maximumf %255, %257 : vector<2x16x128xf32>
    %260 = math.absf %258 : vector<2x16x128xf32>
    %cst_32 = arith.constant 0.000000e+00 : f32
    %261 = vector.broadcast %cst_32 : f32 to vector<2x16x128xf32>
    %262 = arith.subf %261, %260 : vector<2x16x128xf32>
    %263 = math.exp %262 : vector<2x16x128xf32>
    %cst_33 = arith.constant 1.000000e+00 : f32
    %264 = vector.broadcast %cst_33 : f32 to vector<2x16x128xf32>
    %265 = arith.addf %264, %263 : vector<2x16x128xf32>
    %266 = math.log %265 : vector<2x16x128xf32>
    %267 = arith.addf %259, %266 : vector<2x16x128xf32>
    %268 = arith.subf %257, %267 : vector<2x16x128xf32>
    %269 = arith.mulf %253, %258 : vector<2x16x128xf32>
    %270 = arith.addf %268, %269 : vector<2x16x128xf32>
    %cst_34 = arith.constant 0.000000e+00 : f32
    %271 = vector.broadcast %cst_34 : f32 to vector<2x16x128xf32>
    %272 = arith.subf %271, %270 : vector<2x16x128xf32>
    %c0_35 = arith.constant 0 : index
    %c0_36 = arith.constant 0 : index
    %c0_37 = arith.constant 0 : index
    %273 = vector.load %arg3[%c0_35, %c0_36, %c0_37] : memref<2x16x128xf32, #tpu.memory_space<vmem>>, vector<2x16x128xf32>
    tpu.vector_store %arg3[%c0_35, %c0_36, %c0_37], %272 {strides = array<i32>} : memref<2x16x128xf32, #tpu.memory_space<vmem>>, vector<2x16x128xf32>,
    return
  }
  func.func @transform_0(%arg0: i32) -> (i32, i32, i32, i32) {
    %c0_i32 = arith.constant 0 : i32
    %c0_i32_0 = arith.constant 0 : i32
    %c0_i32_1 = arith.constant 0 : i32
    %c0_i32_2 = arith.constant 0 : i32
    return %arg0, %c0_i32, %c0_i32_0, %c0_i32_1 : i32, i32, i32, i32
  }
  func.func @transform_1(%arg0: i32) -> (i32, i32, i32, i32) {
    %c0_i32 = arith.constant 0 : i32
    %c0_i32_0 = arith.constant 0 : i32
    %c0_i32_1 = arith.constant 0 : i32
    %c0_i32_2 = arith.constant 0 : i32
    return %arg0, %c0_i32, %c0_i32_0, %c0_i32_1 : i32, i32, i32, i32
  }
  func.func @transform_2(%arg0: i32) -> (i32, i32, i32) {
    %c0_i32 = arith.constant 0 : i32
    %c0_i32_0 = arith.constant 0 : i32
    %c0_i32_1 = arith.constant 0 : i32
    return %arg0, %c0_i32, %c0_i32_0 : i32, i32, i32
  }
}

</mosaic_0001>

<llo_original>
// kernel: tpu_custom_call.1
$region0: #{tpu_custom_call.1}
  #allocation0 [shape = 'u32[]', space=smem, size = 0x4, offset = 0x4, fixed_abs, tag = 'smem constant byte address 0x4 - core index']
  #allocation1 [shape = 'u32[72,128]{1,0:T(1,128)}', space=vmem, size = 0x9000, scoped, tag = 'internal scratch']
  %s0 = inlined_call_operand.hbm [shape: f32[4,2,16,128], index: 0, kind: input, shape index: {}]
  %s1 = inlined_call_operand.hbm [shape: f32[4,3,16,128], index: 1, kind: input, shape index: {}]
  %s2 = inlined_call_operand.hbm [shape: f32[4,16,128], index: 2, kind: output, shape index: {}]
  %s3 = sld [smem:[#allocation0]]
  $region49: #{tpu_custom_call.1} parent=0
    _
  %s5 = ssub.s32 1, %s3
  %s6 = scalar_select 0, %s5, %s3
  $region1: #{tpu_custom_call.1} parent=0
    #allocation2 [shape = 'u8[65536]{0}', space=vmem, size = 0x10000, scoped, tag = 'input window, operand 0']
    #allocation3 [shape = 's32[2]{0}', space=sflag, size = 0x8, scoped, tag = 'scoped memory for tpu_custom_call.1']
    #allocation4 [shape = 's32[2]{0}', space=sflag, size = 0x8, scoped, tag = 'scoped memory for tpu_custom_call.1']
    #allocation5 [shape = 'u8[98304]{0}', space=vmem, size = 0x18000, scoped, tag = 'input window, operand 1']
    #allocation6 [shape = 's32[2]{0}', space=sflag, size = 0x8, scoped, tag = 'scoped memory for tpu_custom_call.1']
    #allocation7 [shape = 'u8[32768]{0}', space=vmem, size = 0x8000, scoped, tag = 'output window, operand 0']
    %7 = vsyncpa [#allocation3], 0
    %s8 = scalar_lea.sflag [#allocation3], 1
    %9 = vsyncpa %s8, 0
    %10 = vsyncpa [#allocation6], 0
    %s11 = scalar_lea.sflag [#allocation6], 1
    %12 = vsyncpa %s11, 0
    %13 = vsyncpa [#allocation4], 0
    %s14 = scalar_lea.sflag [#allocation4], 1
    %15 = vsyncpa %s14, 0
    loop: start=0, step=1, limit=4
    $region2: #{tpu_custom_call.1} parent=1 // loop_pre_header
      _
    $region3: #{tpu_custom_call.1} parent=1 // loop_header
      %s17 = sphi 0, %s21
      %p18 = scmp.ge.s32.totalorder %s17, 4
      %s27 = sphi 0, %s29
      %s30 = sphi 0, %s27
      %s31 = sphi 0, %s30
      %s47 = sphi 0, %s31
      %s53 = sphi 0, %s55
      %s56 = sphi 0, %s53
      %s57 = sphi 0, %s56
      %s73 = sphi 0, %s57
      %s79 = sphi 0, %s81
      %s82 = sphi 0, %s79
      %s83 = sphi 0, %s82
      %s99 = sphi 0, %s83
    $region4: #{tpu_custom_call.1} parent=1 // loop_header_branch
      %20 = sbr.rel (%p18) target = $region8
    $region5: #{tpu_custom_call.1} parent=1 // loop_body
      %s22 = ssub.s32 %s17, 1
      %s23 = ssub.s32 %s17, 2
      %s24 = sadd.s32 %s17, 1
      %s25 = ssub.s32 %s17, %s24
      %p26 = scmp.eq.s32.totalorder %s25, 0
      %s28 = sadd.s32 %s27, 1
      %s29 = scalar_select %p26, %s27, %s28
      %p32 = pneg %p26
      %p33 = scmp.eq.s32.totalorder %s17, 1
      %p34 = por %p32, %p33
      %p35 = scmp.ne.s32.totalorder %s27, %s30
      %p36 = scmp.eq.s32.totalorder %s17, 0
      %p37 = por %p35, %p36
      %p38 = scmp.ne.s32.totalorder %s27, %s30
      %p39 = scmp.eq.s32.totalorder %s22, 1
      %p40 = por %p38, %p39
      %p41 = scmp.ne.s32.totalorder %s30, %s31
      %p42 = scmp.eq.s32.totalorder %s22, 0
      %p43 = por %p41, %p42
      %p44 = scmp.ne.s32.totalorder %s30, %s31
      %p45 = scmp.eq.s32.totalorder %s23, 1
      %p46 = por %p44, %p45
      %p48 = scmp.ne.s32.totalorder %s31, %s47
      %p49 = scmp.eq.s32.totalorder %s23, 0
      %p50 = por %p48, %p49
      %s51 = ssub.s32 %s17, %s24
      %p52 = scmp.eq.s32.totalorder %s51, 0
      %s54 = sadd.s32 %s53, 1
      %s55 = scalar_select %p52, %s53, %s54
      %p58 = pneg %p52
      %p59 = scmp.eq.s32.totalorder %s17, 1
      %p60 = por %p58, %p59
      %p61 = scmp.ne.s32.totalorder %s53, %s56
      %p62 = scmp.eq.s32.totalorder %s17, 0
      %p63 = por %p61, %p62
      %p64 = scmp.ne.s32.totalorder %s53, %s56
      %p65 = scmp.eq.s32.totalorder %s22, 1
      %p66 = por %p64, %p65
      %p67 = scmp.ne.s32.totalorder %s56, %s57
      %p68 = scmp.eq.s32.totalorder %s22, 0
      %p69 = por %p67, %p68
      %p70 = scmp.ne.s32.totalorder %s56, %s57
      %p71 = scmp.eq.s32.totalorder %s23, 1
      %p72 = por %p70, %p71
      %p74 = scmp.ne.s32.totalorder %s57, %s73
      %p75 = scmp.eq.s32.totalorder %s23, 0
      %p76 = por %p74, %p75
      %s77 = ssub.s32 %s17, %s24
      %p78 = scmp.eq.s32.totalorder %s77, 0
      %s80 = sadd.s32 %s79, 1
      %s81 = scalar_select %p78, %s79, %s80
      %p84 = pneg %p78
      %p85 = scmp.eq.s32.totalorder %s17, 1
      %p86 = por %p84, %p85
      %p87 = scmp.ne.s32.totalorder %s79, %s82
      %p88 = scmp.eq.s32.totalorder %s17, 0
      %p89 = por %p87, %p88
      %p90 = scmp.ne.s32.totalorder %s79, %s82
      %p91 = scmp.eq.s32.totalorder %s22, 1
      %p92 = por %p90, %p91
      %p93 = scmp.ne.s32.totalorder %s82, %s83
      %p94 = scmp.eq.s32.totalorder %s22, 0
      %p95 = por %p93, %p94
      %p96 = scmp.ne.s32.totalorder %s82, %s83
      %p97 = scmp.eq.s32.totalorder %s23, 1
      %p98 = por %p96, %p97
      %p100 = scmp.ne.s32.totalorder %s83, %s99
      %p101 = scmp.eq.s32.totalorder %s23, 0
      %p102 = por %p100, %p101
      %p103 = scmp.le.s32.totalorder 1, %s17
      %p104 = scmp.lt.s32.totalorder %s17, 3
      %p105 = pnand %p103, %p104
      %p106 = pneg %p105
      // Predicated region
      $region9: #{tpu_custom_call.1} parent=5 // pred_check
        _
      $region10: #{tpu_custom_call.1} parent=5 // pred_check_branch
        %108 = sbr.rel (%p105) target = $region12
      $region11: #{tpu_custom_call.1} parent=5 // pred_region
        %s109 = ssub.s32 %s17, 1
      $region12: #{tpu_custom_call.1} parent=5 // pred_fallthru
        _
      %p110 = scmp.lt.s32.totalorder %s17, 2
      // Predicated region
      $region13: #{tpu_custom_call.1} parent=5 // pred_check
        %p111 = pneg %p110
      $region14: #{tpu_custom_call.1} parent=5 // pred_check_branch
        %113 = sbr.rel (%p111) target = $region16
      $region15: #{tpu_custom_call.1} parent=5 // pred_region
        // Predicated region
        $region17: #{tpu_custom_call.1} parent=15 // pred_check
          %p114 = pneg %p37
        $region18: #{tpu_custom_call.1} parent=15 // pred_check_branch
          %116 = sbr.rel (%p114) target = $region20
        $region19: #{tpu_custom_call.1} parent=15 // pred_region
          %s117 = sand.u32 %s27, 1
          %s118 = scalar_lea.sflag [#allocation3], %s117
          %s119 = sand.u32 %s27, 1
          %s120 = smul.addr %s119, 64
          %s121 = scalar_lea.vmem [#allocation2], %s120
          %s122 = smul.u32 2, %s17
          %124 = vsyncadd %s118, 0
          %s125 = smul.addr %s122, 4
          %s126 = smul.addr %s125, 8
          %s127 = scalar_lea.hbm %s0, %s126
          %s128 = sshll.u32 %s127, 4
          %s129 = int_to_ptr.hbm [resolvable:$true] %s128
          %s130 = sshll.u32 %s121, 4
          %s131 = int_to_ptr.vmem [resolvable:$true] %s130
          %136 = dma.hbm_to_vmem [thread:$0]  %s129, 1024, %s131, %s118, 128, 128, 8
        $region20: #{tpu_custom_call.1} parent=15 // pred_fallthru
          _
        // Predicated region
        $region21: #{tpu_custom_call.1} parent=15 // pred_check
          %p137 = pneg %p63
        $region22: #{tpu_custom_call.1} parent=15 // pred_check_branch
          %139 = sbr.rel (%p137) target = $region24
        $region23: #{tpu_custom_call.1} parent=15 // pred_region
          %s140 = sand.u32 %s53, 1
          %s141 = scalar_lea.sflag [#allocation6], %s140
          %s142 = sand.u32 %s53, 1
          %s143 = smul.addr %s142, 96
          %s144 = scalar_lea.vmem [#allocation5], %s143
          %s145 = smul.u32 2, %s17
          %147 = vsyncadd %s141, 0
          %s148 = smul.addr %s145, 6
          %s149 = smul.addr %s148, 8
          %s150 = scalar_lea.hbm %s1, %s149
          %s151 = sshll.u32 %s150, 4
          %s152 = int_to_ptr.hbm [resolvable:$true] %s151
          %s153 = sshll.u32 %s144, 4
          %s154 = int_to_ptr.vmem [resolvable:$true] %s153
          %159 = dma.hbm_to_vmem [thread:$0]  %s152, 1536, %s154, %s141, 128, 128, 8
        $region24: #{tpu_custom_call.1} parent=15 // pred_fallthru
          _
      $region16: #{tpu_custom_call.1} parent=5 // pred_fallthru
        _
      %p160 = scmp.le.s32.totalorder 1, %s17
      %p161 = scmp.lt.s32.totalorder %s17, 3
      %p162 = pnand %p160, %p161
      %p163 = pneg %p162
      // Predicated region
      $region25: #{tpu_custom_call.1} parent=5 // pred_check
        _
      $region26: #{tpu_custom_call.1} parent=5 // pred_check_branch
        %165 = sbr.rel (%p162) target = $region28
      $region27: #{tpu_custom_call.1} parent=5 // pred_region
        %s166 = ssub.s32 %s17, 1
        %s167 = sand.u32 %s30, 1
        %s168 = scalar_lea.sflag [#allocation3], %s167
        %s169 = sand.u32 %s30, 1
        %s170 = smul.addr %s169, 64
        %s171 = scalar_lea.vmem [#allocation2], %s170
        // Predicated region
        $region29: #{tpu_custom_call.1} parent=27 // pred_check
          %p172 = pneg %p43
        $region30: #{tpu_custom_call.1} parent=27 // pred_check_branch
          %174 = sbr.rel (%p172) target = $region32
        $region31: #{tpu_custom_call.1} parent=27 // pred_region
          %176 = dma.done %s168, 1024
        $region32: #{tpu_custom_call.1} parent=27 // pred_fallthru
          _
        %s177 = sand.u32 %s56, 1
        %s178 = scalar_lea.sflag [#allocation6], %s177
        %s179 = sand.u32 %s56, 1
        %s180 = smul.addr %s179, 96
        %s181 = scalar_lea.vmem [#allocation5], %s180
        // Predicated region
        $region33: #{tpu_custom_call.1} parent=27 // pred_check
          %p182 = pneg %p69
        $region34: #{tpu_custom_call.1} parent=27 // pred_check_branch
          %184 = sbr.rel (%p182) target = $region36
        $region35: #{tpu_custom_call.1} parent=27 // pred_region
          %186 = dma.done %s178, 1536
        $region36: #{tpu_custom_call.1} parent=27 // pred_fallthru
          _
        %s187 = sand.u32 %s30, 1
        %s188 = scalar_lea.sflag [#allocation3], %s187
        %s189 = sand.u32 %s30, 1
        %s190 = smul.addr %s189, 64
        %s191 = scalar_lea.vmem [#allocation2], %s190
        %p192 = pneg %p43
        %p193 = pneg %p40
        %s194 = sand.u32 %s56, 1
        %s195 = scalar_lea.sflag [#allocation6], %s194
        %s196 = sand.u32 %s56, 1
        %s197 = smul.addr %s196, 96
        %s198 = scalar_lea.vmem [#allocation5], %s197
        %p199 = pneg %p69
        %p200 = pneg %p66
        %p201 = pneg %p95
        %p202 = pneg %p92
        %s203 = sand.u32 %s82, 1
        %s204 = scalar_lea.sflag [#allocation4], %s203
        %s205 = sand.u32 %s82, 1
        %s206 = smul.addr %s205, 32
        %s207 = scalar_lea.vmem [#allocation7], %s206
        %s208 = smul.u32 2, %s22
        %s209 = smul.u32 2, %s22
        %s210 = smul.u32 2, %s22
        %v211 = vld [vmem:[%s171] sm:$0xff]
        %v212 = vld [vmem:[%s171 + $0x8] sm:$0xff]
        %v213 = vld [vmem:[%s171 + $0x10] sm:$0xff]
        %v214 = vld [vmem:[%s171 + $0x18] sm:$0xff]
        %v215 = vld [vmem:[%s171 + $0x20] sm:$0xff]
        %v216 = vld [vmem:[%s171 + $0x28] sm:$0xff]
        %v217 = vld [vmem:[%s171 + $0x30] sm:$0xff]
        %v218 = vld [vmem:[%s171 + $0x38] sm:$0xff]
        %v219 = vld [vmem:[%s181] sm:$0xff]
        %v220 = vld [vmem:[%s181 + $0x8] sm:$0xff]
        %v221 = vld [vmem:[%s181 + $0x10] sm:$0xff]
        %v222 = vld [vmem:[%s181 + $0x18] sm:$0xff]
        %v223 = vld [vmem:[%s181 + $0x20] sm:$0xff]
        %v224 = vld [vmem:[%s181 + $0x28] sm:$0xff]
        %v225 = vld [vmem:[%s181 + $0x30] sm:$0xff]
        %v226 = vld [vmem:[%s181 + $0x38] sm:$0xff]
        %v227 = vld [vmem:[%s181 + $0x40] sm:$0xff]
        %v228 = vld [vmem:[%s181 + $0x48] sm:$0xff]
        %v229 = vld [vmem:[%s181 + $0x50] sm:$0xff]
        %v230 = vld [vmem:[%s181 + $0x58] sm:$0xff]
        %v231 = vlaneseq
        %v232 = vand.u32 %v231, 127
        %vm233 = vcmp.lt.s32.totalorder %v232, 0
        %v234 = vsub.s32 0, %v232
        %v235 = vsel %vm233, %v234, %v232
        %v236 = vshrl.u32 %v235, 4
        %v237 = vand.u32 %v235, 15
        %v238 = vsub.s32 0, %v237
        %v239 = vsel %vm233, %v238, %v237
        %vm240 = vcmp.ne.s32.totalorder %v239, 0
        %vm241 = vcmp.lt.s32.totalorder %v239, 0
        %vm242 = vmand %vm241, %vm240
        %v243 = vadd.s32 %v239, 16
        %v244 = vsel %vm242, %v243, %v239
        %vm245 = vcmp.eq.s32.totalorder %v244, 0
        %vm246 = vcmp.eq.s32.totalorder %v244, 15
        %v249 = vrot.slane %v219, 1
        %v250 = vrot.slane %v225, 1
        %vm255 = vcmask 1040384
        %v256 = vrot.slane %v219, 7
        %v257 = vrot.slane %v220, 7
        %v258 = vsel %vm255, %v256, %v257
        %v259 = vrot.slane %v225, 7
        %v260 = vrot.slane %v226, 7
        %v261 = vsel %vm255, %v259, %v260
        %v266 = vsel %vm255, %v249, %v256
        %v267 = vsel %vm255, %v250, %v259
        %vm268 = vcmask 1046528
        %v269 = vrot.slane %v220, 1
        %v270 = vsel %vm268, %v249, %v269
        %v271 = vrot.slane %v226, 1
        %v272 = vsel %vm268, %v250, %v271
        %v279 = vsel %vm268, %v269, %v257
        %v280 = vsel %vm268, %v271, %v260
        %v281 = vmul.f32 %v219, 2.0
        %v282 = vmul.f32 %v220, 2.0
        %v283 = vmul.f32 %v225, 2.0
        %v284 = vmul.f32 %v226, 2.0
        %v285 = vadd.f32 %v266, %v281
        %v286 = vadd.f32 %v258, %v282
        %v287 = vadd.f32 %v267, %v283
        %v288 = vadd.f32 %v261, %v284
        %v289 = vadd.f32 %v285, %v270
        %v290 = vadd.f32 %v286, %v279
        %v291 = vadd.f32 %v287, %v272
        %v292 = vadd.f32 %v288, %v280
        %v293 = vsub.f32 %v266, %v270
        %v294 = vsub.f32 %v258, %v279
        %v295 = vsub.f32 %v267, %v272
        %v296 = vsub.f32 %v261, %v280
        %301 = vrot.lane.b32.xlu0 %v289, 1
        %v302 = vpop.permute.xlu0 %301
        %303 = vrot.lane.b32.xlu0 %v290, 1
        %v304 = vpop.permute.xlu0 %303
        %305 = vrot.lane.b32.xlu0 %v291, 1
        %v306 = vpop.permute.xlu0 %305
        %307 = vrot.lane.b32.xlu0 %v292, 1
        %v308 = vpop.permute.xlu0 %307
        %313 = vrot.lane.b32.xlu0 %v289, 127
        %v314 = vpop.permute.xlu0 %313
        %315 = vrot.lane.b32.xlu0 %v290, 127
        %v316 = vpop.permute.xlu0 %315
        %317 = vrot.lane.b32.xlu0 %v291, 127
        %v318 = vpop.permute.xlu0 %317
        %319 = vrot.lane.b32.xlu0 %v292, 127
        %v320 = vpop.permute.xlu0 %319
        %v325 = vsel %vm245, %v314, %v302
        %v326 = vsel %vm245, %v316, %v304
        %v327 = vsel %vm245, %v318, %v306
        %v328 = vsel %vm245, %v320, %v308
        %v329 = vsel %vm246, %v302, %v314
        %v330 = vsel %vm246, %v304, %v316
        %v331 = vsel %vm246, %v306, %v318
        %v332 = vsel %vm246, %v308, %v320
        %v333 = vsub.f32 %v325, %v329
        %v334 = vsub.f32 %v326, %v330
        %v335 = vsub.f32 %v327, %v331
        %v336 = vsub.f32 %v328, %v332
        %341 = vrot.lane.b32.xlu0 %v293, 1
        %v342 = vpop.permute.xlu0 %341
        %343 = vrot.lane.b32.xlu0 %v294, 1
        %v344 = vpop.permute.xlu0 %343
        %345 = vrot.lane.b32.xlu0 %v295, 1
        %v346 = vpop.permute.xlu0 %345
        %347 = vrot.lane.b32.xlu0 %v296, 1
        %v348 = vpop.permute.xlu0 %347
        %353 = vrot.lane.b32.xlu0 %v293, 127
        %v354 = vpop.permute.xlu0 %353
        %355 = vrot.lane.b32.xlu0 %v294, 127
        %v356 = vpop.permute.xlu0 %355
        %357 = vrot.lane.b32.xlu0 %v295, 127
        %v358 = vpop.permute.xlu0 %357
        %359 = vrot.lane.b32.xlu0 %v296, 127
        %v360 = vpop.permute.xlu0 %359
        %v365 = vsel %vm245, %v354, %v342
        %v366 = vsel %vm245, %v356, %v344
        %v367 = vsel %vm245, %v358, %v346
        %v368 = vsel %vm245, %v360, %v348
        %v369 = vsel %vm246, %v342, %v354
        %v370 = vsel %vm246, %v344, %v356
        %v371 = vsel %vm246, %v346, %v358
        %v372 = vsel %vm246, %v348, %v360
        %v373 = vmul.f32 %v293, 2.0
        %v374 = vmul.f32 %v294, 2.0
        %v375 = vmul.f32 %v295, 2.0
        %v376 = vmul.f32 %v296, 2.0
        %v377 = vadd.f32 %v365, %v373
        %v378 = vadd.f32 %v366, %v374
        %v379 = vadd.f32 %v367, %v375
        %v380 = vadd.f32 %v368, %v376
        %v381 = vadd.f32 %v377, %v369
        %v382 = vadd.f32 %v378, %v370
        %v383 = vadd.f32 %v379, %v371
        %v384 = vadd.f32 %v380, %v372
        %v385 = vmul.f32 %v333, %v333
        %v386 = vmul.f32 %v334, %v334
        %v387 = vmul.f32 %v335, %v335
        %v388 = vmul.f32 %v336, %v336
        %v389 = vmul.f32 %v381, %v381
        %v390 = vmul.f32 %v382, %v382
        %v391 = vmul.f32 %v383, %v383
        %v392 = vmul.f32 %v384, %v384
        %v393 = vadd.f32 %v385, %v389
        %v394 = vadd.f32 %v386, %v390
        %v395 = vadd.f32 %v387, %v391
        %v396 = vadd.f32 %v388, %v392
        %v397 = vadd.f32 %v393, 1e-08
        %v398 = vadd.f32 %v394, 1e-08
        %v399 = vadd.f32 %v395, 1e-08
        %v400 = vadd.f32 %v396, 1e-08
        %v401 = vrsqrt.pop %v397
        %v402 = vmul.f32 %v401, %v397
        %v403 = vmul.f32 %v402, %v401
        %v404 = vmul.f32 0.5, %v403
        %v405 = vsub.f32 1.5, %v404
        %v406 = vmul.f32 %v401, %v405
        %v407 = vmul.f32 %v397, %v406
        %vm408 = vcmp.eq.f32.partialorder %v397, inf
        %v409 = vsel %vm408, %v397, %v407
        %vm410 = vcmp.eq.f32.partialorder %v397, 0.0
        %v411 = vand.u32 %v397, 2147483648
        %v412 = vsel %vm410, %v411, %v409
        %v413 = vrsqrt.pop %v398
        %v414 = vmul.f32 %v413, %v398
        %v415 = vmul.f32 %v414, %v413
        %v416 = vmul.f32 0.5, %v415
        %v417 = vsub.f32 1.5, %v416
        %v418 = vmul.f32 %v413, %v417
        %v419 = vmul.f32 %v398, %v418
        %vm420 = vcmp.eq.f32.partialorder %v398, inf
        %v421 = vsel %vm420, %v398, %v419
        %vm422 = vcmp.eq.f32.partialorder %v398, 0.0
        %v423 = vand.u32 %v398, 2147483648
        %v424 = vsel %vm422, %v423, %v421
        %v425 = vrsqrt.pop %v399
        %v426 = vmul.f32 %v425, %v399
        %v427 = vmul.f32 %v426, %v425
        %v428 = vmul.f32 0.5, %v427
        %v429 = vsub.f32 1.5, %v428
        %v430 = vmul.f32 %v425, %v429
        %v431 = vmul.f32 %v399, %v430
        %vm432 = vcmp.eq.f32.partialorder %v399, inf
        %v433 = vsel %vm432, %v399, %v431
        %vm434 = vcmp.eq.f32.partialorder %v399, 0.0
        %v435 = vand.u32 %v399, 2147483648
        %v436 = vsel %vm434, %v435, %v433
        %v437 = vrsqrt.pop %v400
        %v438 = vmul.f32 %v437, %v400
        %v439 = vmul.f32 %v438, %v437
        %v440 = vmul.f32 0.5, %v439
        %v441 = vsub.f32 1.5, %v440
        %v442 = vmul.f32 %v437, %v441
        %v443 = vmul.f32 %v400, %v442
        %vm444 = vcmp.eq.f32.partialorder %v400, inf
        %v445 = vsel %vm444, %v400, %v443
        %vm446 = vcmp.eq.f32.partialorder %v400, 0.0
        %v447 = vand.u32 %v400, 2147483648
        %v448 = vsel %vm446, %v447, %v445
        %v449 = vadd.f32 %v412, 0.0
        %v450 = vadd.f32 %v424, 0.0
        %v451 = vadd.f32 %v436, 0.0
        %v452 = vadd.f32 %v448, 0.0
        %v455 = vrot.slane %v221, 1
        %v456 = vrot.slane %v227, 1
        %v461 = vrot.slane %v221, 7
        %v462 = vrot.slane %v222, 7
        %v463 = vsel %vm255, %v461, %v462
        %v464 = vrot.slane %v227, 7
        %v465 = vrot.slane %v228, 7
        %v466 = vsel %vm255, %v464, %v465
        %v471 = vsel %vm255, %v455, %v461
        %v472 = vsel %vm255, %v456, %v464
        %v473 = vrot.slane %v222, 1
        %v474 = vsel %vm268, %v455, %v473
        %v475 = vrot.slane %v228, 1
        %v476 = vsel %vm268, %v456, %v475
        %v483 = vsel %vm268, %v473, %v462
        %v484 = vsel %vm268, %v475, %v465
        %v485 = vmul.f32 %v221, 2.0
        %v486 = vmul.f32 %v222, 2.0
        %v487 = vmul.f32 %v227, 2.0
        %v488 = vmul.f32 %v228, 2.0
        %v489 = vadd.f32 %v471, %v485
        %v490 = vadd.f32 %v463, %v486
        %v491 = vadd.f32 %v472, %v487
        %v492 = vadd.f32 %v466, %v488
        %v493 = vadd.f32 %v489, %v474
        %v494 = vadd.f32 %v490, %v483
        %v495 = vadd.f32 %v491, %v476
        %v496 = vadd.f32 %v492, %v484
        %v497 = vsub.f32 %v471, %v474
        %v498 = vsub.f32 %v463, %v483
        %v499 = vsub.f32 %v472, %v476
        %v500 = vsub.f32 %v466, %v484
        %505 = vrot.lane.b32.xlu0 %v493, 1
        %v506 = vpop.permute.xlu0 %505
        %507 = vrot.lane.b32.xlu0 %v494, 1
        %v508 = vpop.permute.xlu0 %507
        %509 = vrot.lane.b32.xlu0 %v495, 1
        %v510 = vpop.permute.xlu0 %509
        %511 = vrot.lane.b32.xlu0 %v496, 1
        %v512 = vpop.permute.xlu0 %511
        %517 = vrot.lane.b32.xlu0 %v493, 127
        %v518 = vpop.permute.xlu0 %517
        %519 = vrot.lane.b32.xlu0 %v494, 127
        %v520 = vpop.permute.xlu0 %519
        %521 = vrot.lane.b32.xlu0 %v495, 127
        %v522 = vpop.permute.xlu0 %521
        %523 = vrot.lane.b32.xlu0 %v496, 127
        %v524 = vpop.permute.xlu0 %523
        %v529 = vsel %vm245, %v518, %v506
        %v530 = vsel %vm245, %v520, %v508
        %v531 = vsel %vm245, %v522, %v510
        %v532 = vsel %vm245, %v524, %v512
        %v533 = vsel %vm246, %v506, %v518
        %v534 = vsel %vm246, %v508, %v520
        %v535 = vsel %vm246, %v510, %v522
        %v536 = vsel %vm246, %v512, %v524
        %v537 = vsub.f32 %v529, %v533
        %v538 = vsub.f32 %v530, %v534
        %v539 = vsub.f32 %v531, %v535
        %v540 = vsub.f32 %v532, %v536
        %545 = vrot.lane.b32.xlu0 %v497, 1
        %v546 = vpop.permute.xlu0 %545
        %547 = vrot.lane.b32.xlu0 %v498, 1
        %v548 = vpop.permute.xlu0 %547
        %549 = vrot.lane.b32.xlu0 %v499, 1
        %v550 = vpop.permute.xlu0 %549
        %551 = vrot.lane.b32.xlu0 %v500, 1
        %v552 = vpop.permute.xlu0 %551
        %557 = vrot.lane.b32.xlu0 %v497, 127
        %v558 = vpop.permute.xlu0 %557
        %559 = vrot.lane.b32.xlu0 %v498, 127
        %v560 = vpop.permute.xlu0 %559
        %561 = vrot.lane.b32.xlu0 %v499, 127
        %v562 = vpop.permute.xlu0 %561
        %563 = vrot.lane.b32.xlu0 %v500, 127
        %v564 = vpop.permute.xlu0 %563
        %v569 = vsel %vm245, %v558, %v546
        %v570 = vsel %vm245, %v560, %v548
        %v571 = vsel %vm245, %v562, %v550
        %v572 = vsel %vm245, %v564, %v552
        %v573 = vsel %vm246, %v546, %v558
        %v574 = vsel %vm246, %v548, %v560
        %v575 = vsel %vm246, %v550, %v562
        %v576 = vsel %vm246, %v552, %v564
        %v577 = vmul.f32 %v497, 2.0
        %v578 = vmul.f32 %v498, 2.0
        %v579 = vmul.f32 %v499, 2.0
        %v580 = vmul.f32 %v500, 2.0
        %v581 = vadd.f32 %v569, %v577
        %v582 = vadd.f32 %v570, %v578
        %v583 = vadd.f32 %v571, %v579
        %v584 = vadd.f32 %v572, %v580
        %v585 = vadd.f32 %v581, %v573
        %v586 = vadd.f32 %v582, %v574
        %v587 = vadd.f32 %v583, %v575
        %v588 = vadd.f32 %v584, %v576
        %v589 = vmul.f32 %v537, %v537
        %v590 = vmul.f32 %v538, %v538
        %v591 = vmul.f32 %v539, %v539
        %v592 = vmul.f32 %v540, %v540
        %v593 = vmul.f32 %v585, %v585
        %v594 = vmul.f32 %v586, %v586
        %v595 = vmul.f32 %v587, %v587
        %v596 = vmul.f32 %v588, %v588
        %v597 = vadd.f32 %v589, %v593
        %v598 = vadd.f32 %v590, %v594
        %v599 = vadd.f32 %v591, %v595
        %v600 = vadd.f32 %v592, %v596
        %v601 = vadd.f32 %v597, 1e-08
        %v602 = vadd.f32 %v598, 1e-08
        %v603 = vadd.f32 %v599, 1e-08
        %v604 = vadd.f32 %v600, 1e-08
        %v605 = vrsqrt.pop %v601
        %v606 = vmul.f32 %v605, %v601
        %v607 = vmul.f32 %v606, %v605
        %v608 = vmul.f32 0.5, %v607
        %v609 = vsub.f32 1.5, %v608
        %v610 = vmul.f32 %v605, %v609
        %v611 = vmul.f32 %v601, %v610
        %vm612 = vcmp.eq.f32.partialorder %v601, inf
        %v613 = vsel %vm612, %v601, %v611
        %vm614 = vcmp.eq.f32.partialorder %v601, 0.0
        %v615 = vand.u32 %v601, 2147483648
        %v616 = vsel %vm614, %v615, %v613
        %v617 = vrsqrt.pop %v602
        %v618 = vmul.f32 %v617, %v602
        %v619 = vmul.f32 %v618, %v617
        %v620 = vmul.f32 0.5, %v619
        %v621 = vsub.f32 1.5, %v620
        %v622 = vmul.f32 %v617, %v621
        %v623 = vmul.f32 %v602, %v622
        %vm624 = vcmp.eq.f32.partialorder %v602, inf
        %v625 = vsel %vm624, %v602, %v623
        %vm626 = vcmp.eq.f32.partialorder %v602, 0.0
        %v627 = vand.u32 %v602, 2147483648
        %v628 = vsel %vm626, %v627, %v625
        %v629 = vrsqrt.pop %v603
        %v630 = vmul.f32 %v629, %v603
        %v631 = vmul.f32 %v630, %v629
        %v632 = vmul.f32 0.5, %v631
        %v633 = vsub.f32 1.5, %v632
        %v634 = vmul.f32 %v629, %v633
        %v635 = vmul.f32 %v603, %v634
        %vm636 = vcmp.eq.f32.partialorder %v603, inf
        %v637 = vsel %vm636, %v603, %v635
        %vm638 = vcmp.eq.f32.partialorder %v603, 0.0
        %v639 = vand.u32 %v603, 2147483648
        %v640 = vsel %vm638, %v639, %v637
        %v641 = vrsqrt.pop %v604
        %v642 = vmul.f32 %v641, %v604
        %v643 = vmul.f32 %v642, %v641
        %v644 = vmul.f32 0.5, %v643
        %v645 = vsub.f32 1.5, %v644
        %v646 = vmul.f32 %v641, %v645
        %v647 = vmul.f32 %v604, %v646
        %vm648 = vcmp.eq.f32.partialorder %v604, inf
        %v649 = vsel %vm648, %v604, %v647
        %vm650 = vcmp.eq.f32.partialorder %v604, 0.0
        %v651 = vand.u32 %v604, 2147483648
        %v652 = vsel %vm650, %v651, %v649
        %v653 = vadd.f32 %v449, %v616
        %v654 = vadd.f32 %v450, %v628
        %v655 = vadd.f32 %v451, %v640
        %v656 = vadd.f32 %v452, %v652
        %v659 = vrot.slane %v223, 1
        %v660 = vrot.slane %v229, 1
        %v665 = vrot.slane %v223, 7
        %v666 = vrot.slane %v224, 7
        %v667 = vsel %vm255, %v665, %v666
        %v668 = vrot.slane %v229, 7
        %v669 = vrot.slane %v230, 7
        %v670 = vsel %vm255, %v668, %v669
        %v675 = vsel %vm255, %v659, %v665
        %v676 = vsel %vm255, %v660, %v668
        %v677 = vrot.slane %v224, 1
        %v678 = vsel %vm268, %v659, %v677
        %v679 = vrot.slane %v230, 1
        %v680 = vsel %vm268, %v660, %v679
        %v687 = vsel %vm268, %v677, %v666
        %v688 = vsel %vm268, %v679, %v669
        %v689 = vmul.f32 %v223, 2.0
        %v690 = vmul.f32 %v224, 2.0
        %v691 = vmul.f32 %v229, 2.0
        %v692 = vmul.f32 %v230, 2.0
        %v693 = vadd.f32 %v675, %v689
        %v694 = vadd.f32 %v667, %v690
        %v695 = vadd.f32 %v676, %v691
        %v696 = vadd.f32 %v670, %v692
        %v697 = vadd.f32 %v693, %v678
        %v698 = vadd.f32 %v694, %v687
        %v699 = vadd.f32 %v695, %v680
        %v700 = vadd.f32 %v696, %v688
        %v701 = vsub.f32 %v675, %v678
        %v702 = vsub.f32 %v667, %v687
        %v703 = vsub.f32 %v676, %v680
        %v704 = vsub.f32 %v670, %v688
        %709 = vrot.lane.b32.xlu0 %v697, 1
        %v710 = vpop.permute.xlu0 %709
        %711 = vrot.lane.b32.xlu0 %v698, 1
        %v712 = vpop.permute.xlu0 %711
        %713 = vrot.lane.b32.xlu0 %v699, 1
        %v714 = vpop.permute.xlu0 %713
        %715 = vrot.lane.b32.xlu0 %v700, 1
        %v716 = vpop.permute.xlu0 %715
        %721 = vrot.lane.b32.xlu0 %v697, 127
        %v722 = vpop.permute.xlu0 %721
        %723 = vrot.lane.b32.xlu0 %v698, 127
        %v724 = vpop.permute.xlu0 %723
        %725 = vrot.lane.b32.xlu0 %v699, 127
        %v726 = vpop.permute.xlu0 %725
        %727 = vrot.lane.b32.xlu0 %v700, 127
        %v728 = vpop.permute.xlu0 %727
        %v733 = vsel %vm245, %v722, %v710
        %v734 = vsel %vm245, %v724, %v712
        %v735 = vsel %vm245, %v726, %v714
        %v736 = vsel %vm245, %v728, %v716
        %v737 = vsel %vm246, %v710, %v722
        %v738 = vsel %vm246, %v712, %v724
        %v739 = vsel %vm246, %v714, %v726
        %v740 = vsel %vm246, %v716, %v728
        %v741 = vsub.f32 %v733, %v737
        %v742 = vsub.f32 %v734, %v738
        %v743 = vsub.f32 %v735, %v739
        %v744 = vsub.f32 %v736, %v740
        %749 = vrot.lane.b32.xlu0 %v701, 1
        %v750 = vpop.permute.xlu0 %749
        %751 = vrot.lane.b32.xlu0 %v702, 1
        %v752 = vpop.permute.xlu0 %751
        %753 = vrot.lane.b32.xlu0 %v703, 1
        %v754 = vpop.permute.xlu0 %753
        %755 = vrot.lane.b32.xlu0 %v704, 1
        %v756 = vpop.permute.xlu0 %755
        %761 = vrot.lane.b32.xlu0 %v701, 127
        %v762 = vpop.permute.xlu0 %761
        %763 = vrot.lane.b32.xlu0 %v702, 127
        %v764 = vpop.permute.xlu0 %763
        %765 = vrot.lane.b32.xlu0 %v703, 127
        %v766 = vpop.permute.xlu0 %765
        %767 = vrot.lane.b32.xlu0 %v704, 127
        %v768 = vpop.permute.xlu0 %767
        %v773 = vsel %vm245, %v762, %v750
        %v774 = vsel %vm245, %v764, %v752
        %v775 = vsel %vm245, %v766, %v754
        %v776 = vsel %vm245, %v768, %v756
        %v777 = vsel %vm246, %v750, %v762
        %v778 = vsel %vm246, %v752, %v764
        %v779 = vsel %vm246, %v754, %v766
        %v780 = vsel %vm246, %v756, %v768
        %v781 = vmul.f32 %v701, 2.0
        %v782 = vmul.f32 %v702, 2.0
        %v783 = vmul.f32 %v703, 2.0
        %v784 = vmul.f32 %v704, 2.0
        %v785 = vadd.f32 %v773, %v781
        %v786 = vadd.f32 %v774, %v782
        %v787 = vadd.f32 %v775, %v783
        %v788 = vadd.f32 %v776, %v784
        %v789 = vadd.f32 %v785, %v777
        %v790 = vadd.f32 %v786, %v778
        %v791 = vadd.f32 %v787, %v779
        %v792 = vadd.f32 %v788, %v780
        %v793 = vmul.f32 %v741, %v741
        %v794 = vmul.f32 %v742, %v742
        %v795 = vmul.f32 %v743, %v743
        %v796 = vmul.f32 %v744, %v744
        %v797 = vmul.f32 %v789, %v789
        %v798 = vmul.f32 %v790, %v790
        %v799 = vmul.f32 %v791, %v791
        %v800 = vmul.f32 %v792, %v792
        %v801 = vadd.f32 %v793, %v797
        %v802 = vadd.f32 %v794, %v798
        %v803 = vadd.f32 %v795, %v799
        %v804 = vadd.f32 %v796, %v800
        %v805 = vadd.f32 %v801, 1e-08
        %v806 = vadd.f32 %v802, 1e-08
        %v807 = vadd.f32 %v803, 1e-08
        %v808 = vadd.f32 %v804, 1e-08
        %v809 = vrsqrt.pop %v805
        %v810 = vmul.f32 %v809, %v805
        %v811 = vmul.f32 %v810, %v809
        %v812 = vmul.f32 0.5, %v811
        %v813 = vsub.f32 1.5, %v812
        %v814 = vmul.f32 %v809, %v813
        %v815 = vmul.f32 %v805, %v814
        %vm816 = vcmp.eq.f32.partialorder %v805, inf
        %v817 = vsel %vm816, %v805, %v815
        %vm818 = vcmp.eq.f32.partialorder %v805, 0.0
        %v819 = vand.u32 %v805, 2147483648
        %v820 = vsel %vm818, %v819, %v817
        %v821 = vrsqrt.pop %v806
        %v822 = vmul.f32 %v821, %v806
        %v823 = vmul.f32 %v822, %v821
        %v824 = vmul.f32 0.5, %v823
        %v825 = vsub.f32 1.5, %v824
        %v826 = vmul.f32 %v821, %v825
        %v827 = vmul.f32 %v806, %v826
        %vm828 = vcmp.eq.f32.partialorder %v806, inf
        %v829 = vsel %vm828, %v806, %v827
        %vm830 = vcmp.eq.f32.partialorder %v806, 0.0
        %v831 = vand.u32 %v806, 2147483648
        %v832 = vsel %vm830, %v831, %v829
        %v833 = vrsqrt.pop %v807
        %v834 = vmul.f32 %v833, %v807
        %v835 = vmul.f32 %v834, %v833
        %v836 = vmul.f32 0.5, %v835
        %v837 = vsub.f32 1.5, %v836
        %v838 = vmul.f32 %v833, %v837
        %v839 = vmul.f32 %v807, %v838
        %vm840 = vcmp.eq.f32.partialorder %v807, inf
        %v841 = vsel %vm840, %v807, %v839
        %vm842 = vcmp.eq.f32.partialorder %v807, 0.0
        %v843 = vand.u32 %v807, 2147483648
        %v844 = vsel %vm842, %v843, %v841
        %v845 = vrsqrt.pop %v808
        %v846 = vmul.f32 %v845, %v808
        %v847 = vmul.f32 %v846, %v845
        %v848 = vmul.f32 0.5, %v847
        %v849 = vsub.f32 1.5, %v848
        %v850 = vmul.f32 %v845, %v849
        %v851 = vmul.f32 %v808, %v850
        %vm852 = vcmp.eq.f32.partialorder %v808, inf
        %v853 = vsel %vm852, %v808, %v851
        %vm854 = vcmp.eq.f32.partialorder %v808, 0.0
        %v855 = vand.u32 %v808, 2147483648
        %v856 = vsel %vm854, %v855, %v853
        %v857 = vadd.f32 %v653, %v820
        %v858 = vadd.f32 %v654, %v832
        %v859 = vadd.f32 %v655, %v844
        %v860 = vadd.f32 %v656, %v856
        %v861 = vmul.f32 %v857, 0.33333334
        %v862 = vmul.f32 %v858, 0.33333334
        %v863 = vmul.f32 %v859, 0.33333334
        %v864 = vmul.f32 %v860, 0.33333334
        %v865 = vmax.f32 %v861, %v862
        %v866 = vrot.slane %v865, 4
        %v867 = vmax.f32 %v865, %v866
        %v868 = vrot.slane %v867, 2
        %v869 = vmax.f32 %v867, %v868
        %v870 = vrot.slane %v869, 1
        %v871 = vmax.f32 %v869, %v870
        %v872 = vmax.f32 %v863, %v864
        %v873 = vrot.slane %v872, 4
        %v874 = vmax.f32 %v872, %v873
        %v875 = vrot.slane %v874, 2
        %v876 = vmax.f32 %v874, %v875
        %v877 = vrot.slane %v876, 1
        %v878 = vmax.f32 %v876, %v877
        %v879 = vmin.f32 %v861, %v862
        %v880 = vrot.slane %v879, 4
        %v881 = vmin.f32 %v879, %v880
        %v882 = vrot.slane %v881, 2
        %v883 = vmin.f32 %v881, %v882
        %v884 = vrot.slane %v883, 1
        %v885 = vmin.f32 %v883, %v884
        %v886 = vmin.f32 %v863, %v864
        %v887 = vrot.slane %v886, 4
        %v888 = vmin.f32 %v886, %v887
        %v889 = vrot.slane %v888, 2
        %v890 = vmin.f32 %v888, %v889
        %v891 = vrot.slane %v890, 1
        %v892 = vmin.f32 %v890, %v891
        %vm893 = vcmp.lt.s32.totalorder %v244, 15
        %896 = vrot.lane.b32.xlu0 %v871, 127
        %v897 = vpop.permute.xlu0 %896
        %898 = vrot.lane.b32.xlu0 %v878, 127
        %v899 = vpop.permute.xlu0 %898
        %902 = vrot.lane.b32.xlu0 %v871, 15
        %v903 = vpop.permute.xlu0 %902
        %904 = vrot.lane.b32.xlu0 %v878, 15
        %v905 = vpop.permute.xlu0 %904
        %v908 = vsel %vm893, %v897, %v903
        %v909 = vsel %vm893, %v899, %v905
        %v910 = vmax.f32 %v871, %v908
        %v911 = vmax.f32 %v878, %v909
        %914 = vrot.lane.b32.xlu0 %v885, 127
        %v915 = vpop.permute.xlu0 %914
        %916 = vrot.lane.b32.xlu0 %v892, 127
        %v917 = vpop.permute.xlu0 %916
        %920 = vrot.lane.b32.xlu0 %v885, 15
        %v921 = vpop.permute.xlu0 %920
        %922 = vrot.lane.b32.xlu0 %v892, 15
        %v923 = vpop.permute.xlu0 %922
        %v926 = vsel %vm893, %v915, %v921
        %v927 = vsel %vm893, %v917, %v923
        %v928 = vmin.f32 %v885, %v926
        %v929 = vmin.f32 %v892, %v927
        %vm930 = vcmp.lt.s32.totalorder %v244, 14
        %933 = vrot.lane.b32.xlu0 %v910, 126
        %v934 = vpop.permute.xlu0 %933
        %935 = vrot.lane.b32.xlu0 %v911, 126
        %v936 = vpop.permute.xlu0 %935
        %939 = vrot.lane.b32.xlu0 %v910, 14
        %v940 = vpop.permute.xlu0 %939
        %941 = vrot.lane.b32.xlu0 %v911, 14
        %v942 = vpop.permute.xlu0 %941
        %v945 = vsel %vm930, %v934, %v940
        %v946 = vsel %vm930, %v936, %v942
        %v947 = vmax.f32 %v910, %v945
        %v948 = vmax.f32 %v911, %v946
        %951 = vrot.lane.b32.xlu0 %v928, 126
        %v952 = vpop.permute.xlu0 %951
        %953 = vrot.lane.b32.xlu0 %v929, 126
        %v954 = vpop.permute.xlu0 %953
        %957 = vrot.lane.b32.xlu0 %v928, 14
        %v958 = vpop.permute.xlu0 %957
        %959 = vrot.lane.b32.xlu0 %v929, 14
        %v960 = vpop.permute.xlu0 %959
        %v963 = vsel %vm930, %v952, %v958
        %v964 = vsel %vm930, %v954, %v960
        %v965 = vmin.f32 %v928, %v963
        %v966 = vmin.f32 %v929, %v964
        %vm967 = vcmp.lt.s32.totalorder %v244, 12
        %970 = vrot.lane.b32.xlu0 %v947, 124
        %v971 = vpop.permute.xlu0 %970
        %972 = vrot.lane.b32.xlu0 %v948, 124
        %v973 = vpop.permute.xlu0 %972
        %976 = vrot.lane.b32.xlu0 %v947, 12
        %v977 = vpop.permute.xlu0 %976
        %978 = vrot.lane.b32.xlu0 %v948, 12
        %v979 = vpop.permute.xlu0 %978
        %v982 = vsel %vm967, %v971, %v977
        %v983 = vsel %vm967, %v973, %v979
        %v984 = vmax.f32 %v947, %v982
        %v985 = vmax.f32 %v948, %v983
        %988 = vrot.lane.b32.xlu0 %v965, 124
        %v989 = vpop.permute.xlu0 %988
        %990 = vrot.lane.b32.xlu0 %v966, 124
        %v991 = vpop.permute.xlu0 %990
        %994 = vrot.lane.b32.xlu0 %v965, 12
        %v995 = vpop.permute.xlu0 %994
        %996 = vrot.lane.b32.xlu0 %v966, 12
        %v997 = vpop.permute.xlu0 %996
        %v1000 = vsel %vm967, %v989, %v995
        %v1001 = vsel %vm967, %v991, %v997
        %v1002 = vmin.f32 %v965, %v1000
        %v1003 = vmin.f32 %v966, %v1001
        %vm1004 = vcmp.lt.s32.totalorder %v244, 8
        %1007 = vrot.lane.b32.xlu0 %v984, 120
        %v1008 = vpop.permute.xlu0 %1007
        %1009 = vrot.lane.b32.xlu0 %v985, 120
        %v1010 = vpop.permute.xlu0 %1009
        %1013 = vrot.lane.b32.xlu0 %v984, 8
        %v1014 = vpop.permute.xlu0 %1013
        %1015 = vrot.lane.b32.xlu0 %v985, 8
        %v1016 = vpop.permute.xlu0 %1015
        %v1019 = vsel %vm1004, %v1008, %v1014
        %v1020 = vsel %vm1004, %v1010, %v1016
        %v1021 = vmax.f32 %v984, %v1019
        %v1022 = vmax.f32 %v985, %v1020
        %1025 = vrot.lane.b32.xlu0 %v1002, 120
        %v1026 = vpop.permute.xlu0 %1025
        %1027 = vrot.lane.b32.xlu0 %v1003, 120
        %v1028 = vpop.permute.xlu0 %1027
        %1031 = vrot.lane.b32.xlu0 %v1002, 8
        %v1032 = vpop.permute.xlu0 %1031
        %1033 = vrot.lane.b32.xlu0 %v1003, 8
        %v1034 = vpop.permute.xlu0 %1033
        %v1037 = vsel %vm1004, %v1026, %v1032
        %v1038 = vsel %vm1004, %v1028, %v1034
        %v1039 = vmin.f32 %v1002, %v1037
        %v1040 = vmin.f32 %v1003, %v1038
        %v1041 = vsub.f32 %v1021, %v1039
        %v1042 = vsub.f32 %v1022, %v1040
        %v1043 = vadd.f32 %v1041, 1e-08
        %v1044 = vadd.f32 %v1042, 1e-08
        %v1045 = vrcp.pop %v1043
        %v1046 = vrcp.pop %v1044
        %v1047 = vmul.f32 %v1043, %v1045
        %v1048 = vmul.f32 %v1044, %v1046
        %v1049 = vsub.f32 2.0, %v1047
        %v1050 = vsub.f32 2.0, %v1048
        %v1051 = vmul.f32 %v1045, %v1049
        %v1052 = vmul.f32 %v1046, %v1050
        %v1053 = vperm.slane %v1039, 0
        %v1054 = vperm.slane %v1040, 0
        %v1055 = vsub.f32 %v861, %v1053
        %v1056 = vsub.f32 %v862, %v1053
        %v1057 = vsub.f32 %v863, %v1054
        %v1058 = vsub.f32 %v864, %v1054
        %v1059 = vperm.slane %v1051, 0
        %v1060 = vperm.slane %v1052, 0
        %v1061 = vmul.f32 %v1055, %v1059
        %v1062 = vmul.f32 %v1056, %v1059
        %v1063 = vmul.f32 %v1057, %v1060
        %v1064 = vmul.f32 %v1058, %v1060
        %v1065 = vsub.f32 %v211, %v213
        %v1066 = vsub.f32 %v212, %v214
        %v1067 = vsub.f32 %v215, %v217
        %v1068 = vsub.f32 %v216, %v218
        %v1069 = vmax.f32 %v211, %v213
        %v1070 = vmax.f32 %v212, %v214
        %v1071 = vmax.f32 %v215, %v217
        %v1072 = vmax.f32 %v216, %v218
        %v1073 = vand.u32 2147483647, %v1065
        %v1074 = vand.u32 2147483647, %v1066
        %v1075 = vand.u32 2147483647, %v1067
        %v1076 = vand.u32 2147483647, %v1068
        %v1077 = vsub.f32 0.0, %v1073
        %v1078 = vsub.f32 0.0, %v1074
        %v1079 = vsub.f32 0.0, %v1075
        %v1080 = vsub.f32 0.0, %v1076
        %v1081 = vmul.f32 %v1077, 1.442695
        %v1082 = vpow.pop %v1081
        %v1083 = vmul.f32 %v1078, 1.442695
        %v1084 = vpow.pop %v1083
        %v1085 = vmul.f32 %v1079, 1.442695
        %v1086 = vpow.pop %v1085
        %v1087 = vmul.f32 %v1080, 1.442695
        %v1088 = vpow.pop %v1087
        %v1089 = vadd.f32 %v1082, 1.0
        %v1090 = vadd.f32 %v1084, 1.0
        %v1091 = vadd.f32 %v1086, 1.0
        %v1092 = vadd.f32 %v1088, 1.0
        %v1093 = vlog2.pop %v1089
        %v1094 = vmul.f32 %v1093, 0.6931472
        %v1095 = vlog2.pop %v1090
        %v1096 = vmul.f32 %v1095, 0.6931472
        %v1097 = vlog2.pop %v1091
        %v1098 = vmul.f32 %v1097, 0.6931472
        %v1099 = vlog2.pop %v1092
        %v1100 = vmul.f32 %v1099, 0.6931472
        %v1101 = vadd.f32 %v1069, %v1094
        %v1102 = vadd.f32 %v1070, %v1096
        %v1103 = vadd.f32 %v1071, %v1098
        %v1104 = vadd.f32 %v1072, %v1100
        %v1105 = vsub.f32 %v213, %v1101
        %v1106 = vsub.f32 %v214, %v1102
        %v1107 = vsub.f32 %v217, %v1103
        %v1108 = vsub.f32 %v218, %v1104
        %v1109 = vmul.f32 %v1061, %v1065
        %v1110 = vmul.f32 %v1062, %v1066
        %v1111 = vmul.f32 %v1063, %v1067
        %v1112 = vmul.f32 %v1064, %v1068
        %v1113 = vadd.f32 %v1105, %v1109
        %v1114 = vadd.f32 %v1106, %v1110
        %v1115 = vadd.f32 %v1107, %v1111
        %v1116 = vadd.f32 %v1108, %v1112
        %v1117 = vsub.f32 0.0, %v1113
        %v1118 = vsub.f32 0.0, %v1114
        %v1119 = vsub.f32 0.0, %v1115
        %v1120 = vsub.f32 0.0, %v1116
        %1121 = vst [vmem:[%s207] sm:$0xff] %v1117
        %1122 = vst [vmem:[%s207 + $0x8] sm:$0xff] %v1118
        %1123 = vst [vmem:[%s207 + $0x10] sm:$0xff] %v1119
        %1124 = vst [vmem:[%s207 + $0x18] sm:$0xff] %v1120
        %s1125 = sand.u32 %s82, 1
        %s1126 = scalar_lea.sflag [#allocation4], %s1125
        %s1127 = sand.u32 %s82, 1
        %s1128 = smul.addr %s1127, 32
        %s1129 = scalar_lea.vmem [#allocation7], %s1128
        // Predicated region
        $region37: #{tpu_custom_call.1} parent=27 // pred_check
          %p1130 = pneg %p92
        $region38: #{tpu_custom_call.1} parent=27 // pred_check_branch
          %1132 = sbr.rel (%p1130) target = $region40
        $region39: #{tpu_custom_call.1} parent=27 // pred_region
          %s1133 = smul.u32 2, %s22
          %1135 = vsyncadd %s1126, 0
          %s1136 = smul.addr %s1133, 2
          %s1137 = smul.addr %s1136, 8
          %s1138 = scalar_lea.hbm %s2, %s1137
          %s1139 = sshll.u32 %s1129, 4
          %s1140 = int_to_ptr.vmem [resolvable:$true] %s1139
          %s1141 = sshll.u32 %s1138, 4
          %s1142 = int_to_ptr.hbm [resolvable:$true] %s1141
          %1147 = dma.vmem_to_hbm [thread:$0]  %s1140, 512, %s1142, %s1126, 128, 128, 8
        $region40: #{tpu_custom_call.1} parent=27 // pred_fallthru
          _
      $region28: #{tpu_custom_call.1} parent=5 // pred_fallthru
        _
      %p1148 = scmp.le.s32.totalorder 2, %s17
      // Predicated region
      $region41: #{tpu_custom_call.1} parent=5 // pred_check
        %p1149 = pneg %p1148
      $region42: #{tpu_custom_call.1} parent=5 // pred_check_branch
        %1151 = sbr.rel (%p1149) target = $region44
      $region43: #{tpu_custom_call.1} parent=5 // pred_region
        %s1152 = ssub.s32 %s17, 2
        // Predicated region
        $region45: #{tpu_custom_call.1} parent=43 // pred_check
          %p1153 = pneg %p98
        $region46: #{tpu_custom_call.1} parent=43 // pred_check_branch
          %1155 = sbr.rel (%p1153) target = $region48
        $region47: #{tpu_custom_call.1} parent=43 // pred_region
          %s1156 = sand.u32 %s83, 1
          %s1157 = scalar_lea.sflag [#allocation4], %s1156
          %s1158 = sand.u32 %s83, 1
          %s1159 = smul.addr %s1158, 32
          %s1160 = scalar_lea.vmem [#allocation7], %s1159
          %1162 = dma.done %s1157, 512
        $region48: #{tpu_custom_call.1} parent=43 // pred_fallthru
          _
      $region44: #{tpu_custom_call.1} parent=5 // pred_fallthru
        _
    $region6: #{tpu_custom_call.1} parent=1 // loop_footer
      %s21 = sadd.s32 1, %s17
    $region7: #{tpu_custom_call.1} parent=1 // loop_footer_branch
      %16 = sbr.rel target = $region3
    $region8: #{tpu_custom_call.1} parent=1 // loop_exit
      _
    %1163 = vsyncpa [#allocation3], 1
    %s1164 = scalar_lea.sflag [#allocation3], 1
    %1165 = vsyncpa %s1164, 1
    %1166 = vsyncpa [#allocation6], 1
    %s1167 = scalar_lea.sflag [#allocation6], 1
    %1168 = vsyncpa %s1167, 1
    %1169 = vsyncpa [#allocation4], 1
    %s1170 = scalar_lea.sflag [#allocation4], 1
    %1171 = vsyncpa %s1170, 1

</llo_original>
